<compile_context>
chip_gen: v6e
topology: v6e:2x2x1
jax: 0.10.0
libtpu: 0.0.40
codegen_flags: <defaults>
</compile_context>

<pallas_src>
import jax
import jax.numpy as jnp
from jax.experimental import pallas as pl
from jax.experimental.pallas import tpu as pltpu


def _encoder_gru_kernel(tok_ref,    # SMEM (T,) int32 token ids (scalar prefetch)
                        emb_ref,    # VMEM (V, 1, Hp) f32 embedding table (resident)
                        h0_ref,     # VMEM (1, Hp)    f32 initial hidden
                        wi_ref,     # VMEM (Hp, 3Hp)  bf16 fused input->gate weights (transposed)
                        wh_ref,     # VMEM (Hp, 3Hp)  bf16 fused hidden->gate weights (transposed)
                        bi_ref,     # VMEM (1, 3Hp)   f32 fused input biases
                        bh_ref,     # VMEM (1, 3Hp)   f32 fused hidden biases
                        out_ref,    # VMEM (T, Hp)    f32 per-step outputs
                        x_vmem):    # VMEM (T, Hp)    f32 scratch: gathered embeddings
    T, Hp = out_ref.shape

    # ---- Phase 1: gather all T embedding rows (tokens live in SMEM; dynamic
    #      index is on the non-tiled leading dim of the (V, 1, Hp) ref).
    for t in range(T):
        x_vmem[t:t + 1, :] = emb_ref[tok_ref[t]]                     # (1, Hp)

    # ---- Phase 2: input projection for ALL steps as one bf16 MXU matmul.
    gi_all = jnp.dot(x_vmem[...].astype(jnp.bfloat16), wi_ref[...],
                     preferred_element_type=jnp.float32) + bi_ref[...]   # (T, 3Hp) f32

    # ---- Phase 3: serial GRU recurrence (latency-bound): one matmul / step.
    h = h0_ref[...]                                                  # (1, Hp) f32
    for t in range(T):
        gi = gi_all[t:t + 1, :]                                      # (1, 3Hp)
        gh = jnp.dot(h.astype(jnp.bfloat16), wh_ref[...],
                     preferred_element_type=jnp.float32) + bh_ref[...]
        # Gate math in f32 (v5e VPU/EUP have no native bf16).
        r = jax.nn.sigmoid(gi[:, 0:Hp] + gh[:, 0:Hp])
        z = jax.nn.sigmoid(gi[:, Hp:2 * Hp] + gh[:, Hp:2 * Hp])
        n = jnp.tanh(gi[:, 2 * Hp:3 * Hp] + r * gh[:, 2 * Hp:3 * Hp])
        h = (1.0 - z) * n + z * h
        out_ref[t:t + 1, :] = h.astype(out_ref.dtype)


def encoder_rnn_forward(tokens, hidden, kp):
    """tokens: int32 (T,); hidden: (1, 1, H) f32; kp: packed kernel params.

    Returns (outputs, hidden_new):
      outputs    (T, 1, H)  -- GRU output at every step (seq-major, batch=1)
      hidden_new (1, 1, H)  -- final hidden state
    For T == 1 this matches EncoderRNN.forward exactly.
    """
    emb3 = kp["emb3"]                       # (V, 1, Hp)
    V, _, Hp = emb3.shape
    H = kp["hidden_size"]
    T = int(tokens.shape[0])

    h0 = jnp.zeros((1, Hp), jnp.float32).at[:, :H].set(
        hidden.reshape(1, H).astype(jnp.float32))

    grid_spec = pltpu.PrefetchScalarGridSpec(
        num_scalar_prefetch=1,                # token ids -> SMEM
        grid=(1,),                            # single invocation; time loop is in-kernel
        in_specs=[
            pl.BlockSpec((V, 1, Hp), lambda i, tok: (0, 0, 0)),     # embedding (resident)
            pl.BlockSpec((1, Hp), lambda i, tok: (0, 0)),           # h0
            pl.BlockSpec((Hp, 3 * Hp), lambda i, tok: (0, 0)),      # W_i fused (bf16)
            pl.BlockSpec((Hp, 3 * Hp), lambda i, tok: (0, 0)),      # W_h fused (bf16)
            pl.BlockSpec((1, 3 * Hp), lambda i, tok: (0, 0)),       # b_i fused
            pl.BlockSpec((1, 3 * Hp), lambda i, tok: (0, 0)),       # b_h fused
        ],
        out_specs=pl.BlockSpec((T, Hp), lambda i, tok: (0, 0)),     # lane-dense output slab
        scratch_shapes=[pltpu.VMEM((T, Hp), jnp.float32)],          # gathered X slab
    )

    out = pl.pallas_call(
        _encoder_gru_kernel,
        out_shape=jax.ShapeDtypeStruct((T, Hp), jnp.float32),
        grid_spec=grid_spec,
        compiler_params=pltpu.CompilerParams(
            dimension_semantics=("arbitrary",)),     # recurrence -> sequential
    )(tokens.astype(jnp.int32), emb3, h0,
      kp["w_i_t"], kp["w_h_t"], kp["b_i"], kp["b_h"])

    outputs = out[:, :H].reshape(T, 1, H)
    hidden_new = outputs[T - 1].reshape(1, 1, H)
    return outputs, hidden_new


def init_params(key, input_size, hidden_size):
    """Deterministic init mirroring nn.Embedding + nn.GRU parameter shapes."""
    H = hidden_size
    ks = jax.random.split(key, 13)
    bound = 1.0 / jnp.sqrt(H)
    u = lambda k, shape: jax.random.uniform(k, shape, jnp.float32, -bound, bound)

    return {
        # nn.Embedding(input_size, H): weight (V, H), N(0, 1) init.
        "embedding": jax.random.normal(ks[0], (input_size, H), jnp.float32),
        # nn.GRU weight_ih_l0 / weight_hh_l0 split into per-gate (H, H) blocks
        # (PyTorch computes x @ W_ir^T etc.).
        "w_ir": u(ks[1], (H, H)), "w_iz": u(ks[2], (H, H)), "w_in": u(ks[3], (H, H)),
        "w_hr": u(ks[4], (H, H)), "w_hz": u(ks[5], (H, H)), "w_hn": u(ks[6], (H, H)),
        "b_ir": u(ks[7], (1, H)), "b_iz": u(ks[8], (1, H)), "b_in": u(ks[9], (1, H)),
        "b_hr": u(ks[10], (1, H)), "b_hz": u(ks[11], (1, H)), "b_hn": u(ks[12], (1, H)),
    }


def pack_params(p, lane=128):
    """Fused, transposed, lane-padded kernel operands (weights in bf16)."""
    V, H = p["embedding"].shape
    Hp = ((H + lane - 1) // lane) * lane

    def pad_vec(b):   # (1, H) -> (1, Hp)
        return jnp.pad(b, ((0, 0), (0, Hp - H)))

    def pad_sq(w):    # (H, H) -> (Hp, Hp), zero pad (keeps padded hidden dims at 0)
        return jnp.pad(w, ((0, Hp - H), (0, Hp - H)))

    emb3 = jnp.pad(p["embedding"], ((0, 0), (0, Hp - H))).reshape(V, 1, Hp)

    # Kernel computes x(1,Hp) @ W(Hp,3Hp): column blocks are gates [r | z | n].
    w_i_t = jnp.concatenate([pad_sq(p["w_ir"]).T, pad_sq(p["w_iz"]).T,
                             pad_sq(p["w_in"]).T], axis=1).astype(jnp.bfloat16)
    w_h_t = jnp.concatenate([pad_sq(p["w_hr"]).T, pad_sq(p["w_hz"]).T,
                             pad_sq(p["w_hn"]).T], axis=1).astype(jnp.bfloat16)
    b_i = jnp.concatenate([pad_vec(p["b_ir"]), pad_vec(p["b_iz"]),
                           pad_vec(p["b_in"])], axis=1)
    b_h = jnp.concatenate([pad_vec(p["b_hr"]), pad_vec(p["b_hz"]),
                           pad_vec(p["b_hn"])], axis=1)
    return {"emb3": emb3, "w_i_t": w_i_t, "w_h_t": w_h_t,
            "b_i": b_i, "b_h": b_h, "hidden_size": H}


def reference_forward_f32(tokens, hidden, p):
    """Pure-f32 step-by-step reference of the PyTorch GRU (exact semantics)."""
    H = p["embedding"].shape[1]
    h = hidden.reshape(1, H)
    outs = []
    for t in range(tokens.shape[0]):
        x = p["embedding"][tokens[t]].reshape(1, H)
        r = jax.nn.sigmoid(x @ p["w_ir"].T + p["b_ir"] + h @ p["w_hr"].T + p["b_hr"])
        z = jax.nn.sigmoid(x @ p["w_iz"].T + p["b_iz"] + h @ p["w_hz"].T + p["b_hz"])
        n = jnp.tanh(x @ p["w_in"].T + p["b_in"] + r * (h @ p["w_hn"].T + p["b_hn"]))
        h = (1.0 - z) * n + z * h
        outs.append(h)
    return jnp.stack(outs, axis=0).reshape(-1, 1, H), h.reshape(1, 1, H)


def reference_forward_bf16(tokens, hidden, p):
    """Reference matching the kernel's numerics (bf16 MXU inputs, f32 accum/elementwise)."""
    H = p["embedding"].shape[1]
    wi = jnp.concatenate([p["w_ir"].T, p["w_iz"].T, p["w_in"].T], axis=1).astype(jnp.bfloat16)
    wh = jnp.concatenate([p["w_hr"].T, p["w_hz"].T, p["w_hn"].T], axis=1).astype(jnp.bfloat16)
    bi = jnp.concatenate([p["b_ir"], p["b_iz"], p["b_in"]], axis=1)
    bh = jnp.concatenate([p["b_hr"], p["b_hz"], p["b_hn"]], axis=1)
    x_all = p["embedding"][tokens]                                   # (T, H)
    gi_all = jnp.dot(x_all.astype(jnp.bfloat16), wi,
                     preferred_element_type=jnp.float32) + bi
    h = hidden.reshape(1, H).astype(jnp.float32)
    outs = []
    for t in range(tokens.shape[0]):
        gi = gi_all[t:t + 1]
        gh = jnp.dot(h.astype(jnp.bfloat16), wh,
                     preferred_element_type=jnp.float32) + bh
        r = jax.nn.sigmoid(gi[:, 0:H] + gh[:, 0:H])
        z = jax.nn.sigmoid(gi[:, H:2 * H] + gh[:, H:2 * H])
        n = jnp.tanh(gi[:, 2 * H:3 * H] + r * gh[:, 2 * H:3 * H])
        h = (1.0 - z) * n + z * h
        outs.append(h)
    return jnp.stack(outs, axis=0).reshape(-1, 1, H), h.reshape(1, 1, H)


if __name__ == "__main__":
    INPUT_SIZE = 16    # vocab size
    HIDDEN = 32
    SEQ_LEN = 8

    key = jax.random.PRNGKey(0)
    pkey, tkey = jax.random.split(key)
    params = init_params(pkey, INPUT_SIZE, HIDDEN)
    kparams = pack_params(params)

    tokens = jax.random.randint(tkey, (SEQ_LEN,), 0, INPUT_SIZE, dtype=jnp.int32)
    hidden0 = jnp.zeros((1, 1, HIDDEN), jnp.float32)   # EncoderRNN.initHidden()

    outputs, h_new = encoder_rnn_forward(tokens, hidden0, kparams)
    outputs = jax.block_until_ready(outputs)
    h_new = jax.block_until_ready(h_new)
    assert outputs.shape == (SEQ_LEN, 1, HIDDEN)
    assert h_new.shape == (1, 1, HIDDEN)

    # Tight check vs. a reference using identical bf16-MXU / f32 numerics.
    ref_out, ref_h = reference_forward_bf16(tokens, hidden0, params)
    assert jnp.allclose(outputs, ref_out, atol=2e-3, rtol=2e-3)
    assert jnp.allclose(h_new, ref_h, atol=2e-3, rtol=2e-3)

    # Loose check vs. the exact-f32 PyTorch-semantics reference
    # (bf16 MXU operands introduce ~1e-2-level deviations).
    ref_out32, ref_h32 = reference_forward_f32(tokens, hidden0, params)
    assert jnp.allclose(outputs, ref_out32, atol=1e-1, rtol=1e-1)
    assert jnp.allclose(h_new, ref_h32, atol=1e-1, rtol=1e-1)

    # Single-token call still matches the original EncoderRNN.forward contract.
    out1, h1 = encoder_rnn_forward(tokens[:1], hidden0, kparams)
    ref_out1, ref_h1 = reference_forward_bf16(tokens[:1], hidden0, params)
    assert jnp.allclose(jax.block_until_ready(out1), ref_out1, atol=2e-3, rtol=2e-3)
    assert jnp.allclose(jax.block_until_ready(h1), ref_h1, atol=2e-3, rtol=2e-3)

    print("KERNEL_OK")
</pallas_src>

<mosaic_0001>
module attributes {stable_mosaic.version = 11 : i64} {
  func.func @_encoder_gru_kernel(%arg0: i32, %arg1: memref<8xi32, #tpu.memory_space<smem>>, %arg2: memref<16x1x128xf32, #tpu.memory_space<vmem>>, %arg3: memref<1x128xf32, #tpu.memory_space<vmem>>, %arg4: memref<128x384xbf16, #tpu.memory_space<vmem>>, %arg5: memref<128x384xbf16, #tpu.memory_space<vmem>>, %arg6: memref<1x384xf32, #tpu.memory_space<vmem>>, %arg7: memref<1x384xf32, #tpu.memory_space<vmem>>, %arg8: memref<8x128xf32, #tpu.memory_space<vmem>>, %arg9: memref<8x128xf32, #tpu.memory_space<vmem>>) attributes {dimension_semantics = [#tpu.dimension_semantics<arbitrary>], iteration_bounds = array<i64: 1>, scalar_prefetch = 1 : i64, scratch_operands = 1 : i64, tpu.core_type = #tpu.core_type<tc>, window_params = [{pipeline_mode = #tpu.pipeline_mode<synchronous>, transform_indices = @transform_0, window_bounds = array<i64: 16, 1, 128>}, {pipeline_mode = #tpu.pipeline_mode<synchronous>, transform_indices = @transform_1, window_bounds = array<i64: 1, 128>}, {pipeline_mode = #tpu.pipeline_mode<synchronous>, transform_indices = @transform_2, window_bounds = array<i64: 128, 384>}, {pipeline_mode = #tpu.pipeline_mode<synchronous>, transform_indices = @transform_3, window_bounds = array<i64: 128, 384>}, {pipeline_mode = #tpu.pipeline_mode<synchronous>, transform_indices = @transform_4, window_bounds = array<i64: 1, 384>}, {pipeline_mode = #tpu.pipeline_mode<synchronous>, transform_indices = @transform_5, window_bounds = array<i64: 1, 384>}, {pipeline_mode = #tpu.pipeline_mode<synchronous>, transform_indices = @transform_6, window_bounds = array<i64: 8, 128>}]} {
    %c0 = arith.constant 0 : index
    %0 = memref.load %arg1[%c0] : memref<8xi32, #tpu.memory_space<smem>>
    %1 = arith.index_cast %0 : i32 to index
    %c0_0 = arith.constant 0 : index
    %c0_1 = arith.constant 0 : index
    %2 = vector.load %arg2[%1, %c0_0, %c0_1] : memref<16x1x128xf32, #tpu.memory_space<vmem>>, vector<1x1x128xf32>
    %3 = vector.shape_cast %2 : vector<1x1x128xf32> to vector<1x128xf32>
    %c0_2 = arith.constant 0 : index
    %c0_3 = arith.constant 0 : index
    %4 = vector.load %arg9[%c0_2, %c0_3] : memref<8x128xf32, #tpu.memory_space<vmem>>, vector<1x128xf32>
    tpu.vector_store %arg9[%c0_2, %c0_3], %3 {strides = array<i32>} : memref<8x128xf32, #tpu.memory_space<vmem>>, vector<1x128xf32>,
    %c1 = arith.constant 1 : index
    %5 = memref.load %arg1[%c1] : memref<8xi32, #tpu.memory_space<smem>>
    %6 = arith.index_cast %5 : i32 to index
    %c0_4 = arith.constant 0 : index
    %c0_5 = arith.constant 0 : index
    %7 = vector.load %arg2[%6, %c0_4, %c0_5] : memref<16x1x128xf32, #tpu.memory_space<vmem>>, vector<1x1x128xf32>
    %8 = vector.shape_cast %7 : vector<1x1x128xf32> to vector<1x128xf32>
    %c1_6 = arith.constant 1 : index
    %c0_7 = arith.constant 0 : index
    %9 = vector.load %arg9[%c1_6, %c0_7] : memref<8x128xf32, #tpu.memory_space<vmem>>, vector<1x128xf32>
    tpu.vector_store %arg9[%c1_6, %c0_7], %8 {strides = array<i32>} : memref<8x128xf32, #tpu.memory_space<vmem>>, vector<1x128xf32>,
    %c2 = arith.constant 2 : index
    %10 = memref.load %arg1[%c2] : memref<8xi32, #tpu.memory_space<smem>>
    %11 = arith.index_cast %10 : i32 to index
    %c0_8 = arith.constant 0 : index
    %c0_9 = arith.constant 0 : index
    %12 = vector.load %arg2[%11, %c0_8, %c0_9] : memref<16x1x128xf32, #tpu.memory_space<vmem>>, vector<1x1x128xf32>
    %13 = vector.shape_cast %12 : vector<1x1x128xf32> to vector<1x128xf32>
    %c2_10 = arith.constant 2 : index
    %c0_11 = arith.constant 0 : index
    %14 = vector.load %arg9[%c2_10, %c0_11] : memref<8x128xf32, #tpu.memory_space<vmem>>, vector<1x128xf32>
    tpu.vector_store %arg9[%c2_10, %c0_11], %13 {strides = array<i32>} : memref<8x128xf32, #tpu.memory_space<vmem>>, vector<1x128xf32>,
    %c3 = arith.constant 3 : index
    %15 = memref.load %arg1[%c3] : memref<8xi32, #tpu.memory_space<smem>>
    %16 = arith.index_cast %15 : i32 to index
    %c0_12 = arith.constant 0 : index
    %c0_13 = arith.constant 0 : index
    %17 = vector.load %arg2[%16, %c0_12, %c0_13] : memref<16x1x128xf32, #tpu.memory_space<vmem>>, vector<1x1x128xf32>
    %18 = vector.shape_cast %17 : vector<1x1x128xf32> to vector<1x128xf32>
    %c3_14 = arith.constant 3 : index
    %c0_15 = arith.constant 0 : index
    %19 = vector.load %arg9[%c3_14, %c0_15] : memref<8x128xf32, #tpu.memory_space<vmem>>, vector<1x128xf32>
    tpu.vector_store %arg9[%c3_14, %c0_15], %18 {strides = array<i32>} : memref<8x128xf32, #tpu.memory_space<vmem>>, vector<1x128xf32>,
    %c4 = arith.constant 4 : index
    %20 = memref.load %arg1[%c4] : memref<8xi32, #tpu.memory_space<smem>>
    %21 = arith.index_cast %20 : i32 to index
    %c0_16 = arith.constant 0 : index
    %c0_17 = arith.constant 0 : index
    %22 = vector.load %arg2[%21, %c0_16, %c0_17] : memref<16x1x128xf32, #tpu.memory_space<vmem>>, vector<1x1x128xf32>
    %23 = vector.shape_cast %22 : vector<1x1x128xf32> to vector<1x128xf32>
    %c4_18 = arith.constant 4 : index
    %c0_19 = arith.constant 0 : index
    %24 = vector.load %arg9[%c4_18, %c0_19] : memref<8x128xf32, #tpu.memory_space<vmem>>, vector<1x128xf32>
    tpu.vector_store %arg9[%c4_18, %c0_19], %23 {strides = array<i32>} : memref<8x128xf32, #tpu.memory_space<vmem>>, vector<1x128xf32>,
    %c5 = arith.constant 5 : index
    %25 = memref.load %arg1[%c5] : memref<8xi32, #tpu.memory_space<smem>>
    %26 = arith.index_cast %25 : i32 to index
    %c0_20 = arith.constant 0 : index
    %c0_21 = arith.constant 0 : index
    %27 = vector.load %arg2[%26, %c0_20, %c0_21] : memref<16x1x128xf32, #tpu.memory_space<vmem>>, vector<1x1x128xf32>
    %28 = vector.shape_cast %27 : vector<1x1x128xf32> to vector<1x128xf32>
    %c5_22 = arith.constant 5 : index
    %c0_23 = arith.constant 0 : index
    %29 = vector.load %arg9[%c5_22, %c0_23] : memref<8x128xf32, #tpu.memory_space<vmem>>, vector<1x128xf32>
    tpu.vector_store %arg9[%c5_22, %c0_23], %28 {strides = array<i32>} : memref<8x128xf32, #tpu.memory_space<vmem>>, vector<1x128xf32>,
    %c6 = arith.constant 6 : index
    %30 = memref.load %arg1[%c6] : memref<8xi32, #tpu.memory_space<smem>>
    %31 = arith.index_cast %30 : i32 to index
    %c0_24 = arith.constant 0 : index
    %c0_25 = arith.constant 0 : index
    %32 = vector.load %arg2[%31, %c0_24, %c0_25] : memref<16x1x128xf32, #tpu.memory_space<vmem>>, vector<1x1x128xf32>
    %33 = vector.shape_cast %32 : vector<1x1x128xf32> to vector<1x128xf32>
    %c6_26 = arith.constant 6 : index
    %c0_27 = arith.constant 0 : index
    %34 = vector.load %arg9[%c6_26, %c0_27] : memref<8x128xf32, #tpu.memory_space<vmem>>, vector<1x128xf32>
    tpu.vector_store %arg9[%c6_26, %c0_27], %33 {strides = array<i32>} : memref<8x128xf32, #tpu.memory_space<vmem>>, vector<1x128xf32>,
    %c7 = arith.constant 7 : index
    %35 = memref.load %arg1[%c7] : memref<8xi32, #tpu.memory_space<smem>>
    %36 = arith.index_cast %35 : i32 to index
    %c0_28 = arith.constant 0 : index
    %c0_29 = arith.constant 0 : index
    %37 = vector.load %arg2[%36, %c0_28, %c0_29] : memref<16x1x128xf32, #tpu.memory_space<vmem>>, vector<1x1x128xf32>
    %38 = vector.shape_cast %37 : vector<1x1x128xf32> to vector<1x128xf32>
    %c7_30 = arith.constant 7 : index
    %c0_31 = arith.constant 0 : index
    %39 = vector.load %arg9[%c7_30, %c0_31] : memref<8x128xf32, #tpu.memory_space<vmem>>, vector<1x128xf32>
    tpu.vector_store %arg9[%c7_30, %c0_31], %38 {strides = array<i32>} : memref<8x128xf32, #tpu.memory_space<vmem>>, vector<1x128xf32>,
    %c0_32 = arith.constant 0 : index
    %c0_33 = arith.constant 0 : index
    %40 = vector.load %arg9[%c0_32, %c0_33] : memref<8x128xf32, #tpu.memory_space<vmem>>, vector<8x128xf32>
    %41 = arith.truncf %40 : vector<8x128xf32> to vector<8x128xbf16>
    %c0_34 = arith.constant 0 : index
    %c0_35 = arith.constant 0 : index
    %42 = vector.load %arg4[%c0_34, %c0_35] : memref<128x384xbf16, #tpu.memory_space<vmem>>, vector<128x384xbf16>
    %cst = arith.constant dense<0.000000e+00> : vector<8x384xf32>
    %43 = tpu.matmul %41, %42, %cst {dimension_numbers = #tpu.dot_dimension_numbers<[1], [0], [0], [1], [0, 0, 1, 1], [], []>} : vector<8x128xbf16>, vector<128x384xbf16>, vector<8x384xf32> -> vector<8x384xf32>
    %c0_36 = arith.constant 0 : index
    %c0_37 = arith.constant 0 : index
    %44 = vector.load %arg6[%c0_36, %c0_37] : memref<1x384xf32, #tpu.memory_space<vmem>>, vector<1x384xf32>
    %45 = vector.broadcast %44 : vector<1x384xf32> to vector<8x384xf32>
    %46 = arith.addf %43, %45 : vector<8x384xf32>
    %c0_38 = arith.constant 0 : index
    %c0_39 = arith.constant 0 : index
    %47 = vector.load %arg3[%c0_38, %c0_39] : memref<1x128xf32, #tpu.memory_space<vmem>>, vector<1x128xf32>
    %48 = vector.extract_strided_slice %46 {offsets = [0, 0], sizes = [1, 384], strides = [1, 1]} : vector<8x384xf32> to vector<1x384xf32>
    %49 = arith.truncf %47 : vector<1x128xf32> to vector<1x128xbf16>
    %c0_40 = arith.constant 0 : index
    %c0_41 = arith.constant 0 : index
    %50 = vector.load %arg5[%c0_40, %c0_41] : memref<128x384xbf16, #tpu.memory_space<vmem>>, vector<128x384xbf16>
    %cst_42 = arith.constant dense<0.000000e+00> : vector<1x384xf32>
    %51 = tpu.matmul %49, %50, %cst_42 {dimension_numbers = #tpu.dot_dimension_numbers<[1], [0], [0], [1], [0, 0, 1, 1], [], []>} : vector<1x128xbf16>, vector<128x384xbf16>, vector<1x384xf32> -> vector<1x384xf32>
    %c0_43 = arith.constant 0 : index
    %c0_44 = arith.constant 0 : index
    %52 = vector.load %arg7[%c0_43, %c0_44] : memref<1x384xf32, #tpu.memory_space<vmem>>, vector<1x384xf32>
    %53 = arith.addf %51, %52 : vector<1x384xf32>
    %54 = vector.extract_strided_slice %48 {offsets = [0, 0], sizes = [1, 128], strides = [1, 1]} : vector<1x384xf32> to vector<1x128xf32>
    %55 = vector.extract_strided_slice %53 {offsets = [0, 0], sizes = [1, 128], strides = [1, 1]} : vector<1x384xf32> to vector<1x128xf32>
    %56 = arith.addf %54, %55 : vector<1x128xf32>
    %57 = arith.negf %56 : vector<1x128xf32>
    %58 = math.exp %57 : vector<1x128xf32>
    %cst_45 = arith.constant 1.000000e+00 : f32
    %59 = vector.broadcast %cst_45 : f32 to vector<1x128xf32>
    %60 = arith.addf %59, %58 : vector<1x128xf32>
    %61 = arith.divf %59, %60 : vector<1x128xf32>
    %62 = vector.extract_strided_slice %48 {offsets = [0, 128], sizes = [1, 128], strides = [1, 1]} : vector<1x384xf32> to vector<1x128xf32>
    %63 = vector.extract_strided_slice %53 {offsets = [0, 128], sizes = [1, 128], strides = [1, 1]} : vector<1x384xf32> to vector<1x128xf32>
    %64 = arith.addf %62, %63 : vector<1x128xf32>
    %65 = arith.negf %64 : vector<1x128xf32>
    %66 = math.exp %65 : vector<1x128xf32>
    %cst_46 = arith.constant 1.000000e+00 : f32
    %67 = vector.broadcast %cst_46 : f32 to vector<1x128xf32>
    %68 = arith.addf %67, %66 : vector<1x128xf32>
    %69 = arith.divf %67, %68 : vector<1x128xf32>
    %70 = vector.extract_strided_slice %48 {offsets = [0, 256], sizes = [1, 128], strides = [1, 1]} : vector<1x384xf32> to vector<1x128xf32>
    %71 = vector.extract_strided_slice %53 {offsets = [0, 256], sizes = [1, 128], strides = [1, 1]} : vector<1x384xf32> to vector<1x128xf32>
    %72 = arith.mulf %61, %71 : vector<1x128xf32>
    %73 = arith.addf %70, %72 : vector<1x128xf32>
    %74 = math.tanh %73 : vector<1x128xf32>
    %cst_47 = arith.constant 1.000000e+00 : f32
    %75 = vector.broadcast %cst_47 : f32 to vector<1x128xf32>
    %76 = arith.subf %75, %69 : vector<1x128xf32>
    %77 = arith.mulf %76, %74 : vector<1x128xf32>
    %78 = arith.mulf %69, %47 : vector<1x128xf32>
    %79 = arith.addf %77, %78 : vector<1x128xf32>
    %c0_48 = arith.constant 0 : index
    %c0_49 = arith.constant 0 : index
    %80 = vector.load %arg8[%c0_48, %c0_49] : memref<8x128xf32, #tpu.memory_space<vmem>>, vector<1x128xf32>
    tpu.vector_store %arg8[%c0_48, %c0_49], %79 {strides = array<i32>} : memref<8x128xf32, #tpu.memory_space<vmem>>, vector<1x128xf32>,
    %81 = vector.extract_strided_slice %46 {offsets = [1, 0], sizes = [1, 384], strides = [1, 1]} : vector<8x384xf32> to vector<1x384xf32>
    %82 = arith.truncf %79 : vector<1x128xf32> to vector<1x128xbf16>
    %c0_50 = arith.constant 0 : index
    %c0_51 = arith.constant 0 : index
    %83 = vector.load %arg5[%c0_50, %c0_51] : memref<128x384xbf16, #tpu.memory_space<vmem>>, vector<128x384xbf16>
    %cst_52 = arith.constant dense<0.000000e+00> : vector<1x384xf32>
    %84 = tpu.matmul %82, %83, %cst_52 {dimension_numbers = #tpu.dot_dimension_numbers<[1], [0], [0], [1], [0, 0, 1, 1], [], []>} : vector<1x128xbf16>, vector<128x384xbf16>, vector<1x384xf32> -> vector<1x384xf32>
    %c0_53 = arith.constant 0 : index
    %c0_54 = arith.constant 0 : index
    %85 = vector.load %arg7[%c0_53, %c0_54] : memref<1x384xf32, #tpu.memory_space<vmem>>, vector<1x384xf32>
    %86 = arith.addf %84, %85 : vector<1x384xf32>
    %87 = vector.extract_strided_slice %81 {offsets = [0, 0], sizes = [1, 128], strides = [1, 1]} : vector<1x384xf32> to vector<1x128xf32>
    %88 = vector.extract_strided_slice %86 {offsets = [0, 0], sizes = [1, 128], strides = [1, 1]} : vector<1x384xf32> to vector<1x128xf32>
    %89 = arith.addf %87, %88 : vector<1x128xf32>
    %90 = arith.negf %89 : vector<1x128xf32>
    %91 = math.exp %90 : vector<1x128xf32>
    %cst_55 = arith.constant 1.000000e+00 : f32
    %92 = vector.broadcast %cst_55 : f32 to vector<1x128xf32>
    %93 = arith.addf %92, %91 : vector<1x128xf32>
    %94 = arith.divf %92, %93 : vector<1x128xf32>
    %95 = vector.extract_strided_slice %81 {offsets = [0, 128], sizes = [1, 128], strides = [1, 1]} : vector<1x384xf32> to vector<1x128xf32>
    %96 = vector.extract_strided_slice %86 {offsets = [0, 128], sizes = [1, 128], strides = [1, 1]} : vector<1x384xf32> to vector<1x128xf32>
    %97 = arith.addf %95, %96 : vector<1x128xf32>
    %98 = arith.negf %97 : vector<1x128xf32>
    %99 = math.exp %98 : vector<1x128xf32>
    %cst_56 = arith.constant 1.000000e+00 : f32
    %100 = vector.broadcast %cst_56 : f32 to vector<1x128xf32>
    %101 = arith.addf %100, %99 : vector<1x128xf32>
    %102 = arith.divf %100, %101 : vector<1x128xf32>
    %103 = vector.extract_strided_slice %81 {offsets = [0, 256], sizes = [1, 128], strides = [1, 1]} : vector<1x384xf32> to vector<1x128xf32>
    %104 = vector.extract_strided_slice %86 {offsets = [0, 256], sizes = [1, 128], strides = [1, 1]} : vector<1x384xf32> to vector<1x128xf32>
    %105 = arith.mulf %94, %104 : vector<1x128xf32>
    %106 = arith.addf %103, %105 : vector<1x128xf32>
    %107 = math.tanh %106 : vector<1x128xf32>
    %cst_57 = arith.constant 1.000000e+00 : f32
    %108 = vector.broadcast %cst_57 : f32 to vector<1x128xf32>
    %109 = arith.subf %108, %102 : vector<1x128xf32>
    %110 = arith.mulf %109, %107 : vector<1x128xf32>
    %111 = arith.mulf %102, %79 : vector<1x128xf32>
    %112 = arith.addf %110, %111 : vector<1x128xf32>
    %c1_58 = arith.constant 1 : index
    %c0_59 = arith.constant 0 : index
    %113 = vector.load %arg8[%c1_58, %c0_59] : memref<8x128xf32, #tpu.memory_space<vmem>>, vector<1x128xf32>
    tpu.vector_store %arg8[%c1_58, %c0_59], %112 {strides = array<i32>} : memref<8x128xf32, #tpu.memory_space<vmem>>, vector<1x128xf32>,
    %114 = vector.extract_strided_slice %46 {offsets = [2, 0], sizes = [1, 384], strides = [1, 1]} : vector<8x384xf32> to vector<1x384xf32>
    %115 = arith.truncf %112 : vector<1x128xf32> to vector<1x128xbf16>
    %c0_60 = arith.constant 0 : index
    %c0_61 = arith.constant 0 : index
    %116 = vector.load %arg5[%c0_60, %c0_61] : memref<128x384xbf16, #tpu.memory_space<vmem>>, vector<128x384xbf16>
    %cst_62 = arith.constant dense<0.000000e+00> : vector<1x384xf32>
    %117 = tpu.matmul %115, %116, %cst_62 {dimension_numbers = #tpu.dot_dimension_numbers<[1], [0], [0], [1], [0, 0, 1, 1], [], []>} : vector<1x128xbf16>, vector<128x384xbf16>, vector<1x384xf32> -> vector<1x384xf32>
    %c0_63 = arith.constant 0 : index
    %c0_64 = arith.constant 0 : index
    %118 = vector.load %arg7[%c0_63, %c0_64] : memref<1x384xf32, #tpu.memory_space<vmem>>, vector<1x384xf32>
    %119 = arith.addf %117, %118 : vector<1x384xf32>
    %120 = vector.extract_strided_slice %114 {offsets = [0, 0], sizes = [1, 128], strides = [1, 1]} : vector<1x384xf32> to vector<1x128xf32>
    %121 = vector.extract_strided_slice %119 {offsets = [0, 0], sizes = [1, 128], strides = [1, 1]} : vector<1x384xf32> to vector<1x128xf32>
    %122 = arith.addf %120, %121 : vector<1x128xf32>
    %123 = arith.negf %122 : vector<1x128xf32>
    %124 = math.exp %123 : vector<1x128xf32>
    %cst_65 = arith.constant 1.000000e+00 : f32
    %125 = vector.broadcast %cst_65 : f32 to vector<1x128xf32>
    %126 = arith.addf %125, %124 : vector<1x128xf32>
    %127 = arith.divf %125, %126 : vector<1x128xf32>
    %128 = vector.extract_strided_slice %114 {offsets = [0, 128], sizes = [1, 128], strides = [1, 1]} : vector<1x384xf32> to vector<1x128xf32>
    %129 = vector.extract_strided_slice %119 {offsets = [0, 128], sizes = [1, 128], strides = [1, 1]} : vector<1x384xf32> to vector<1x128xf32>
    %130 = arith.addf %128, %129 : vector<1x128xf32>
    %131 = arith.negf %130 : vector<1x128xf32>
    %132 = math.exp %131 : vector<1x128xf32>
    %cst_66 = arith.constant 1.000000e+00 : f32
    %133 = vector.broadcast %cst_66 : f32 to vector<1x128xf32>
    %134 = arith.addf %133, %132 : vector<1x128xf32>
    %135 = arith.divf %133, %134 : vector<1x128xf32>
    %136 = vector.extract_strided_slice %114 {offsets = [0, 256], sizes = [1, 128], strides = [1, 1]} : vector<1x384xf32> to vector<1x128xf32>
    %137 = vector.extract_strided_slice %119 {offsets = [0, 256], sizes = [1, 128], strides = [1, 1]} : vector<1x384xf32> to vector<1x128xf32>
    %138 = arith.mulf %127, %137 : vector<1x128xf32>
    %139 = arith.addf %136, %138 : vector<1x128xf32>
    %140 = math.tanh %139 : vector<1x128xf32>
    %cst_67 = arith.constant 1.000000e+00 : f32
    %141 = vector.broadcast %cst_67 : f32 to vector<1x128xf32>
    %142 = arith.subf %141, %135 : vector<1x128xf32>
    %143 = arith.mulf %142, %140 : vector<1x128xf32>
    %144 = arith.mulf %135, %112 : vector<1x128xf32>
    %145 = arith.addf %143, %144 : vector<1x128xf32>
    %c2_68 = arith.constant 2 : index
    %c0_69 = arith.constant 0 : index
    %146 = vector.load %arg8[%c2_68, %c0_69] : memref<8x128xf32, #tpu.memory_space<vmem>>, vector<1x128xf32>
    tpu.vector_store %arg8[%c2_68, %c0_69], %145 {strides = array<i32>} : memref<8x128xf32, #tpu.memory_space<vmem>>, vector<1x128xf32>,
    %147 = vector.extract_strided_slice %46 {offsets = [3, 0], sizes = [1, 384], strides = [1, 1]} : vector<8x384xf32> to vector<1x384xf32>
    %148 = arith.truncf %145 : vector<1x128xf32> to vector<1x128xbf16>
    %c0_70 = arith.constant 0 : index
    %c0_71 = arith.constant 0 : index
    %149 = vector.load %arg5[%c0_70, %c0_71] : memref<128x384xbf16, #tpu.memory_space<vmem>>, vector<128x384xbf16>
    %cst_72 = arith.constant dense<0.000000e+00> : vector<1x384xf32>
    %150 = tpu.matmul %148, %149, %cst_72 {dimension_numbers = #tpu.dot_dimension_numbers<[1], [0], [0], [1], [0, 0, 1, 1], [], []>} : vector<1x128xbf16>, vector<128x384xbf16>, vector<1x384xf32> -> vector<1x384xf32>
    %c0_73 = arith.constant 0 : index
    %c0_74 = arith.constant 0 : index
    %151 = vector.load %arg7[%c0_73, %c0_74] : memref<1x384xf32, #tpu.memory_space<vmem>>, vector<1x384xf32>
    %152 = arith.addf %150, %151 : vector<1x384xf32>
    %153 = vector.extract_strided_slice %147 {offsets = [0, 0], sizes = [1, 128], strides = [1, 1]} : vector<1x384xf32> to vector<1x128xf32>
    %154 = vector.extract_strided_slice %152 {offsets = [0, 0], sizes = [1, 128], strides = [1, 1]} : vector<1x384xf32> to vector<1x128xf32>
    %155 = arith.addf %153, %154 : vector<1x128xf32>
    %156 = arith.negf %155 : vector<1x128xf32>
    %157 = math.exp %156 : vector<1x128xf32>
    %cst_75 = arith.constant 1.000000e+00 : f32
    %158 = vector.broadcast %cst_75 : f32 to vector<1x128xf32>
    %159 = arith.addf %158, %157 : vector<1x128xf32>
    %160 = arith.divf %158, %159 : vector<1x128xf32>
    %161 = vector.extract_strided_slice %147 {offsets = [0, 128], sizes = [1, 128], strides = [1, 1]} : vector<1x384xf32> to vector<1x128xf32>
    %162 = vector.extract_strided_slice %152 {offsets = [0, 128], sizes = [1, 128], strides = [1, 1]} : vector<1x384xf32> to vector<1x128xf32>
    %163 = arith.addf %161, %162 : vector<1x128xf32>
    %164 = arith.negf %163 : vector<1x128xf32>
    %165 = math.exp %164 : vector<1x128xf32>
    %cst_76 = arith.constant 1.000000e+00 : f32
    %166 = vector.broadcast %cst_76 : f32 to vector<1x128xf32>
    %167 = arith.addf %166, %165 : vector<1x128xf32>
    %168 = arith.divf %166, %167 : vector<1x128xf32>
    %169 = vector.extract_strided_slice %147 {offsets = [0, 256], sizes = [1, 128], strides = [1, 1]} : vector<1x384xf32> to vector<1x128xf32>
    %170 = vector.extract_strided_slice %152 {offsets = [0, 256], sizes = [1, 128], strides = [1, 1]} : vector<1x384xf32> to vector<1x128xf32>
    %171 = arith.mulf %160, %170 : vector<1x128xf32>
    %172 = arith.addf %169, %171 : vector<1x128xf32>
    %173 = math.tanh %172 : vector<1x128xf32>
    %cst_77 = arith.constant 1.000000e+00 : f32
    %174 = vector.broadcast %cst_77 : f32 to vector<1x128xf32>
    %175 = arith.subf %174, %168 : vector<1x128xf32>
    %176 = arith.mulf %175, %173 : vector<1x128xf32>
    %177 = arith.mulf %168, %145 : vector<1x128xf32>
    %178 = arith.addf %176, %177 : vector<1x128xf32>
    %c3_78 = arith.constant 3 : index
    %c0_79 = arith.constant 0 : index
    %179 = vector.load %arg8[%c3_78, %c0_79] : memref<8x128xf32, #tpu.memory_space<vmem>>, vector<1x128xf32>
    tpu.vector_store %arg8[%c3_78, %c0_79], %178 {strides = array<i32>} : memref<8x128xf32, #tpu.memory_space<vmem>>, vector<1x128xf32>,
    %180 = vector.extract_strided_slice %46 {offsets = [4, 0], sizes = [1, 384], strides = [1, 1]} : vector<8x384xf32> to vector<1x384xf32>
    %181 = arith.truncf %178 : vector<1x128xf32> to vector<1x128xbf16>
    %c0_80 = arith.constant 0 : index
    %c0_81 = arith.constant 0 : index
    %182 = vector.load %arg5[%c0_80, %c0_81] : memref<128x384xbf16, #tpu.memory_space<vmem>>, vector<128x384xbf16>
    %cst_82 = arith.constant dense<0.000000e+00> : vector<1x384xf32>
    %183 = tpu.matmul %181, %182, %cst_82 {dimension_numbers = #tpu.dot_dimension_numbers<[1], [0], [0], [1], [0, 0, 1, 1], [], []>} : vector<1x128xbf16>, vector<128x384xbf16>, vector<1x384xf32> -> vector<1x384xf32>
    %c0_83 = arith.constant 0 : index
    %c0_84 = arith.constant 0 : index
    %184 = vector.load %arg7[%c0_83, %c0_84] : memref<1x384xf32, #tpu.memory_space<vmem>>, vector<1x384xf32>
    %185 = arith.addf %183, %184 : vector<1x384xf32>
    %186 = vector.extract_strided_slice %180 {offsets = [0, 0], sizes = [1, 128], strides = [1, 1]} : vector<1x384xf32> to vector<1x128xf32>
    %187 = vector.extract_strided_slice %185 {offsets = [0, 0], sizes = [1, 128], strides = [1, 1]} : vector<1x384xf32> to vector<1x128xf32>
    %188 = arith.addf %186, %187 : vector<1x128xf32>
    %189 = arith.negf %188 : vector<1x128xf32>
    %190 = math.exp %189 : vector<1x128xf32>
    %cst_85 = arith.constant 1.000000e+00 : f32
    %191 = vector.broadcast %cst_85 : f32 to vector<1x128xf32>
    %192 = arith.addf %191, %190 : vector<1x128xf32>
    %193 = arith.divf %191, %192 : vector<1x128xf32>
    %194 = vector.extract_strided_slice %180 {offsets = [0, 128], sizes = [1, 128], strides = [1, 1]} : vector<1x384xf32> to vector<1x128xf32>
    %195 = vector.extract_strided_slice %185 {offsets = [0, 128], sizes = [1, 128], strides = [1, 1]} : vector<1x384xf32> to vector<1x128xf32>
    %196 = arith.addf %194, %195 : vector<1x128xf32>
    %197 = arith.negf %196 : vector<1x128xf32>
    %198 = math.exp %197 : vector<1x128xf32>
    %cst_86 = arith.constant 1.000000e+00 : f32
    %199 = vector.broadcast %cst_86 : f32 to vector<1x128xf32>
    %200 = arith.addf %199, %198 : vector<1x128xf32>
    %201 = arith.divf %199, %200 : vector<1x128xf32>
    %202 = vector.extract_strided_slice %180 {offsets = [0, 256], sizes = [1, 128], strides = [1, 1]} : vector<1x384xf32> to vector<1x128xf32>
    %203 = vector.extract_strided_slice %185 {offsets = [0, 256], sizes = [1, 128], strides = [1, 1]} : vector<1x384xf32> to vector<1x128xf32>
    %204 = arith.mulf %193, %203 : vector<1x128xf32>
    %205 = arith.addf %202, %204 : vector<1x128xf32>
    %206 = math.tanh %205 : vector<1x128xf32>
    %cst_87 = arith.constant 1.000000e+00 : f32
    %207 = vector.broadcast %cst_87 : f32 to vector<1x128xf32>
    %208 = arith.subf %207, %201 : vector<1x128xf32>
    %209 = arith.mulf %208, %206 : vector<1x128xf32>
    %210 = arith.mulf %201, %178 : vector<1x128xf32>
    %211 = arith.addf %209, %210 : vector<1x128xf32>
    %c4_88 = arith.constant 4 : index
    %c0_89 = arith.constant 0 : index
    %212 = vector.load %arg8[%c4_88, %c0_89] : memref<8x128xf32, #tpu.memory_space<vmem>>, vector<1x128xf32>
    tpu.vector_store %arg8[%c4_88, %c0_89], %211 {strides = array<i32>} : memref<8x128xf32, #tpu.memory_space<vmem>>, vector<1x128xf32>,
    %213 = vector.extract_strided_slice %46 {offsets = [5, 0], sizes = [1, 384], strides = [1, 1]} : vector<8x384xf32> to vector<1x384xf32>
    %214 = arith.truncf %211 : vector<1x128xf32> to vector<1x128xbf16>
    %c0_90 = arith.constant 0 : index
    %c0_91 = arith.constant 0 : index
    %215 = vector.load %arg5[%c0_90, %c0_91] : memref<128x384xbf16, #tpu.memory_space<vmem>>, vector<128x384xbf16>
    %cst_92 = arith.constant dense<0.000000e+00> : vector<1x384xf32>
    %216 = tpu.matmul %214, %215, %cst_92 {dimension_numbers = #tpu.dot_dimension_numbers<[1], [0], [0], [1], [0, 0, 1, 1], [], []>} : vector<1x128xbf16>, vector<128x384xbf16>, vector<1x384xf32> -> vector<1x384xf32>
    %c0_93 = arith.constant 0 : index
    %c0_94 = arith.constant 0 : index
    %217 = vector.load %arg7[%c0_93, %c0_94] : memref<1x384xf32, #tpu.memory_space<vmem>>, vector<1x384xf32>
    %218 = arith.addf %216, %217 : vector<1x384xf32>
    %219 = vector.extract_strided_slice %213 {offsets = [0, 0], sizes = [1, 128], strides = [1, 1]} : vector<1x384xf32> to vector<1x128xf32>
    %220 = vector.extract_strided_slice %218 {offsets = [0, 0], sizes = [1, 128], strides = [1, 1]} : vector<1x384xf32> to vector<1x128xf32>
    %221 = arith.addf %219, %220 : vector<1x128xf32>
    %222 = arith.negf %221 : vector<1x128xf32>
    %223 = math.exp %222 : vector<1x128xf32>
    %cst_95 = arith.constant 1.000000e+00 : f32
    %224 = vector.broadcast %cst_95 : f32 to vector<1x128xf32>
    %225 = arith.addf %224, %223 : vector<1x128xf32>
    %226 = arith.divf %224, %225 : vector<1x128xf32>
    %227 = vector.extract_strided_slice %213 {offsets = [0, 128], sizes = [1, 128], strides = [1, 1]} : vector<1x384xf32> to vector<1x128xf32>
    %228 = vector.extract_strided_slice %218 {offsets = [0, 128], sizes = [1, 128], strides = [1, 1]} : vector<1x384xf32> to vector<1x128xf32>
    %229 = arith.addf %227, %228 : vector<1x128xf32>
    %230 = arith.negf %229 : vector<1x128xf32>
    %231 = math.exp %230 : vector<1x128xf32>
    %cst_96 = arith.constant 1.000000e+00 : f32
    %232 = vector.broadcast %cst_96 : f32 to vector<1x128xf32>
    %233 = arith.addf %232, %231 : vector<1x128xf32>
    %234 = arith.divf %232, %233 : vector<1x128xf32>
    %235 = vector.extract_strided_slice %213 {offsets = [0, 256], sizes = [1, 128], strides = [1, 1]} : vector<1x384xf32> to vector<1x128xf32>
    %236 = vector.extract_strided_slice %218 {offsets = [0, 256], sizes = [1, 128], strides = [1, 1]} : vector<1x384xf32> to vector<1x128xf32>
    %237 = arith.mulf %226, %236 : vector<1x128xf32>
    %238 = arith.addf %235, %237 : vector<1x128xf32>
    %239 = math.tanh %238 : vector<1x128xf32>
    %cst_97 = arith.constant 1.000000e+00 : f32
    %240 = vector.broadcast %cst_97 : f32 to vector<1x128xf32>
    %241 = arith.subf %240, %234 : vector<1x128xf32>
    %242 = arith.mulf %241, %239 : vector<1x128xf32>
    %243 = arith.mulf %234, %211 : vector<1x128xf32>
    %244 = arith.addf %242, %243 : vector<1x128xf32>
    %c5_98 = arith.constant 5 : index
    %c0_99 = arith.constant 0 : index
    %245 = vector.load %arg8[%c5_98, %c0_99] : memref<8x128xf32, #tpu.memory_space<vmem>>, vector<1x128xf32>
    tpu.vector_store %arg8[%c5_98, %c0_99], %244 {strides = array<i32>} : memref<8x128xf32, #tpu.memory_space<vmem>>, vector<1x128xf32>,
    %246 = vector.extract_strided_slice %46 {offsets = [6, 0], sizes = [1, 384], strides = [1, 1]} : vector<8x384xf32> to vector<1x384xf32>
    %247 = arith.truncf %244 : vector<1x128xf32> to vector<1x128xbf16>
    %c0_100 = arith.constant 0 : index
    %c0_101 = arith.constant 0 : index
    %248 = vector.load %arg5[%c0_100, %c0_101] : memref<128x384xbf16, #tpu.memory_space<vmem>>, vector<128x384xbf16>
    %cst_102 = arith.constant dense<0.000000e+00> : vector<1x384xf32>
    %249 = tpu.matmul %247, %248, %cst_102 {dimension_numbers = #tpu.dot_dimension_numbers<[1], [0], [0], [1], [0, 0, 1, 1], [], []>} : vector<1x128xbf16>, vector<128x384xbf16>, vector<1x384xf32> -> vector<1x384xf32>
    %c0_103 = arith.constant 0 : index
    %c0_104 = arith.constant 0 : index
    %250 = vector.load %arg7[%c0_103, %c0_104] : memref<1x384xf32, #tpu.memory_space<vmem>>, vector<1x384xf32>
    %251 = arith.addf %249, %250 : vector<1x384xf32>
    %252 = vector.extract_strided_slice %246 {offsets = [0, 0], sizes = [1, 128], strides = [1, 1]} : vector<1x384xf32> to vector<1x128xf32>
    %253 = vector.extract_strided_slice %251 {offsets = [0, 0], sizes = [1, 128], strides = [1, 1]} : vector<1x384xf32> to vector<1x128xf32>
    %254 = arith.addf %252, %253 : vector<1x128xf32>
    %255 = arith.negf %254 : vector<1x128xf32>
    %256 = math.exp %255 : vector<1x128xf32>
    %cst_105 = arith.constant 1.000000e+00 : f32
    %257 = vector.broadcast %cst_105 : f32 to vector<1x128xf32>
    %258 = arith.addf %257, %256 : vector<1x128xf32>
    %259 = arith.divf %257, %258 : vector<1x128xf32>
    %260 = vector.extract_strided_slice %246 {offsets = [0, 128], sizes = [1, 128], strides = [1, 1]} : vector<1x384xf32> to vector<1x128xf32>
    %261 = vector.extract_strided_slice %251 {offsets = [0, 128], sizes = [1, 128], strides = [1, 1]} : vector<1x384xf32> to vector<1x128xf32>
    %262 = arith.addf %260, %261 : vector<1x128xf32>
    %263 = arith.negf %262 : vector<1x128xf32>
    %264 = math.exp %263 : vector<1x128xf32>
    %cst_106 = arith.constant 1.000000e+00 : f32
    %265 = vector.broadcast %cst_106 : f32 to vector<1x128xf32>
    %266 = arith.addf %265, %264 : vector<1x128xf32>
    %267 = arith.divf %265, %266 : vector<1x128xf32>
    %268 = vector.extract_strided_slice %246 {offsets = [0, 256], sizes = [1, 128], strides = [1, 1]} : vector<1x384xf32> to vector<1x128xf32>
    %269 = vector.extract_strided_slice %251 {offsets = [0, 256], sizes = [1, 128], strides = [1, 1]} : vector<1x384xf32> to vector<1x128xf32>
    %270 = arith.mulf %259, %269 : vector<1x128xf32>
    %271 = arith.addf %268, %270 : vector<1x128xf32>
    %272 = math.tanh %271 : vector<1x128xf32>
    %cst_107 = arith.constant 1.000000e+00 : f32
    %273 = vector.broadcast %cst_107 : f32 to vector<1x128xf32>
    %274 = arith.subf %273, %267 : vector<1x128xf32>
    %275 = arith.mulf %274, %272 : vector<1x128xf32>
    %276 = arith.mulf %267, %244 : vector<1x128xf32>
    %277 = arith.addf %275, %276 : vector<1x128xf32>
    %c6_108 = arith.constant 6 : index
    %c0_109 = arith.constant 0 : index
    %278 = vector.load %arg8[%c6_108, %c0_109] : memref<8x128xf32, #tpu.memory_space<vmem>>, vector<1x128xf32>
    tpu.vector_store %arg8[%c6_108, %c0_109], %277 {strides = array<i32>} : memref<8x128xf32, #tpu.memory_space<vmem>>, vector<1x128xf32>,
    %279 = vector.extract_strided_slice %46 {offsets = [7, 0], sizes = [1, 384], strides = [1, 1]} : vector<8x384xf32> to vector<1x384xf32>
    %280 = arith.truncf %277 : vector<1x128xf32> to vector<1x128xbf16>
    %c0_110 = arith.constant 0 : index
    %c0_111 = arith.constant 0 : index
    %281 = vector.load %arg5[%c0_110, %c0_111] : memref<128x384xbf16, #tpu.memory_space<vmem>>, vector<128x384xbf16>
    %cst_112 = arith.constant dense<0.000000e+00> : vector<1x384xf32>
    %282 = tpu.matmul %280, %281, %cst_112 {dimension_numbers = #tpu.dot_dimension_numbers<[1], [0], [0], [1], [0, 0, 1, 1], [], []>} : vector<1x128xbf16>, vector<128x384xbf16>, vector<1x384xf32> -> vector<1x384xf32>
    %c0_113 = arith.constant 0 : index
    %c0_114 = arith.constant 0 : index
    %283 = vector.load %arg7[%c0_113, %c0_114] : memref<1x384xf32, #tpu.memory_space<vmem>>, vector<1x384xf32>
    %284 = arith.addf %282, %283 : vector<1x384xf32>
    %285 = vector.extract_strided_slice %279 {offsets = [0, 0], sizes = [1, 128], strides = [1, 1]} : vector<1x384xf32> to vector<1x128xf32>
    %286 = vector.extract_strided_slice %284 {offsets = [0, 0], sizes = [1, 128], strides = [1, 1]} : vector<1x384xf32> to vector<1x128xf32>
    %287 = arith.addf %285, %286 : vector<1x128xf32>
    %288 = arith.negf %287 : vector<1x128xf32>
    %289 = math.exp %288 : vector<1x128xf32>
    %cst_115 = arith.constant 1.000000e+00 : f32
    %290 = vector.broadcast %cst_115 : f32 to vector<1x128xf32>
    %291 = arith.addf %290, %289 : vector<1x128xf32>
    %292 = arith.divf %290, %291 : vector<1x128xf32>
    %293 = vector.extract_strided_slice %279 {offsets = [0, 128], sizes = [1, 128], strides = [1, 1]} : vector<1x384xf32> to vector<1x128xf32>
    %294 = vector.extract_strided_slice %284 {offsets = [0, 128], sizes = [1, 128], strides = [1, 1]} : vector<1x384xf32> to vector<1x128xf32>
    %295 = arith.addf %293, %294 : vector<1x128xf32>
    %296 = arith.negf %295 : vector<1x128xf32>
    %297 = math.exp %296 : vector<1x128xf32>
    %cst_116 = arith.constant 1.000000e+00 : f32
    %298 = vector.broadcast %cst_116 : f32 to vector<1x128xf32>
    %299 = arith.addf %298, %297 : vector<1x128xf32>
    %300 = arith.divf %298, %299 : vector<1x128xf32>
    %301 = vector.extract_strided_slice %279 {offsets = [0, 256], sizes = [1, 128], strides = [1, 1]} : vector<1x384xf32> to vector<1x128xf32>
    %302 = vector.extract_strided_slice %284 {offsets = [0, 256], sizes = [1, 128], strides = [1, 1]} : vector<1x384xf32> to vector<1x128xf32>
    %303 = arith.mulf %292, %302 : vector<1x128xf32>
    %304 = arith.addf %301, %303 : vector<1x128xf32>
    %305 = math.tanh %304 : vector<1x128xf32>
    %cst_117 = arith.constant 1.000000e+00 : f32
    %306 = vector.broadcast %cst_117 : f32 to vector<1x128xf32>
    %307 = arith.subf %306, %300 : vector<1x128xf32>
    %308 = arith.mulf %307, %305 : vector<1x128xf32>
    %309 = arith.mulf %300, %277 : vector<1x128xf32>
    %310 = arith.addf %308, %309 : vector<1x128xf32>
    %c7_118 = arith.constant 7 : index
    %c0_119 = arith.constant 0 : index
    %311 = vector.load %arg8[%c7_118, %c0_119] : memref<8x128xf32, #tpu.memory_space<vmem>>, vector<1x128xf32>
    tpu.vector_store %arg8[%c7_118, %c0_119], %310 {strides = array<i32>} : memref<8x128xf32, #tpu.memory_space<vmem>>, vector<1x128xf32>,
    return
  }
  func.func @transform_0(%arg0: i32, %arg1: memref<8xi32, #tpu.memory_space<smem>>) -> (i32, i32, i32) {
    %c0_i32 = arith.constant 0 : i32
    %c0_i32_0 = arith.constant 0 : i32
    %c0_i32_1 = arith.constant 0 : i32
    %c0_i32_2 = arith.constant 0 : i32
    return %c0_i32, %c0_i32_0, %c0_i32_1 : i32, i32, i32
  }
  func.func @transform_1(%arg0: i32, %arg1: memref<8xi32, #tpu.memory_space<smem>>) -> (i32, i32) {
    %c0_i32 = arith.constant 0 : i32
    %c0_i32_0 = arith.constant 0 : i32
    %c0_i32_1 = arith.constant 0 : i32
    return %c0_i32, %c0_i32_0 : i32, i32
  }
  func.func @transform_2(%arg0: i32, %arg1: memref<8xi32, #tpu.memory_space<smem>>) -> (i32, i32) {
    %c0_i32 = arith.constant 0 : i32
    %c0_i32_0 = arith.constant 0 : i32
    %c0_i32_1 = arith.constant 0 : i32
    return %c0_i32, %c0_i32_0 : i32, i32
  }
  func.func @transform_3(%arg0: i32, %arg1: memref<8xi32, #tpu.memory_space<smem>>) -> (i32, i32) {
    %c0_i32 = arith.constant 0 : i32
    %c0_i32_0 = arith.constant 0 : i32
    %c0_i32_1 = arith.constant 0 : i32
    return %c0_i32, %c0_i32_0 : i32, i32
  }
  func.func @transform_4(%arg0: i32, %arg1: memref<8xi32, #tpu.memory_space<smem>>) -> (i32, i32) {
    %c0_i32 = arith.constant 0 : i32
    %c0_i32_0 = arith.constant 0 : i32
    %c0_i32_1 = arith.constant 0 : i32
    return %c0_i32, %c0_i32_0 : i32, i32
  }
  func.func @transform_5(%arg0: i32, %arg1: memref<8xi32, #tpu.memory_space<smem>>) -> (i32, i32) {
    %c0_i32 = arith.constant 0 : i32
    %c0_i32_0 = arith.constant 0 : i32
    %c0_i32_1 = arith.constant 0 : i32
    return %c0_i32, %c0_i32_0 : i32, i32
  }
  func.func @transform_6(%arg0: i32, %arg1: memref<8xi32, #tpu.memory_space<smem>>) -> (i32, i32) {
    %c0_i32 = arith.constant 0 : i32
    %c0_i32_0 = arith.constant 0 : i32
    %c0_i32_1 = arith.constant 0 : i32
    return %c0_i32, %c0_i32_0 : i32, i32
  }
}

</mosaic_0001>

<llo_original>
// kernel: tpu_custom_call.1
$region0: #{tpu_custom_call.1}
  #allocation0 [shape = 'u32[]', space=smem, size = 0x4, offset = 0x4, fixed_abs, tag = 'smem constant byte address 0x4 - core index']
  #allocation1 [shape = 'u32[144,128]{1,0:T(1,128)}', space=vmem, size = 0x12000, scoped, tag = 'internal scratch']
  #allocation2 [shape = 'f32[8,128]{1,0:T(8,128)}', space=vmem, size = 0x1000, scoped, tag = 'scratch operand']
  #allocation3 [shape = 's32[1]{0}', space=sflag, size = 0x4, scoped, tag = 'scoped memory for tpu_custom_call.1']
  #allocation4 [shape = 'u8[512]{0}', space=smem, size = 0x200, scoped, tag = 'prefetched SMEM operand 0']
  %s0 = inlined_call_operand.hbm [shape: s32[8], index: 0, kind: input, shape index: {}]
  %s1 = inlined_call_operand.hbm [shape: f32[16,1,128], index: 1, kind: input, shape index: {}]
  %s2 = inlined_call_operand.vmem [shape: f32[1,128], index: 2, kind: input, shape index: {}]
  %s3 = inlined_call_operand.hbm [shape: bf16[128,384], index: 3, kind: input, shape index: {}]
  %s4 = inlined_call_operand.hbm [shape: bf16[128,384], index: 4, kind: input, shape index: {}]
  %s5 = inlined_call_operand.vmem [shape: f32[1,384], index: 5, kind: input, shape index: {}]
  %s6 = inlined_call_operand.vmem [shape: f32[1,384], index: 6, kind: input, shape index: {}]
  %s7 = inlined_call_operand.hbm [shape: f32[8,128], index: 7, kind: output, shape index: {}]
  %s8 = sld [smem:[#allocation0]]
  $region46: #{tpu_custom_call.1} parent=0
    _
  %s10 = ssub.s32 1, %s8
  %s11 = scalar_select 0, %s10, %s8
  %13 = dma.hbm_to_smem %s0, 16, [#allocation4], [#allocation3]
  %14 = dma.done [#allocation3], 16
  %15 = sfence
  $region1: #{tpu_custom_call.1} parent=0
    #allocation5 [shape = 'u8[8192]{0}', space=vmem, size = 0x2000, scoped, tag = 'input window, operand 1, single buffered']
    #allocation6 [shape = 's32[1]{0}', space=sflag, size = 0x4, scoped, tag = 'scoped memory for tpu_custom_call.1']
    #allocation7 [shape = 's32[1]{0}', space=sflag, size = 0x4, scoped, tag = 'scoped memory for tpu_custom_call.1']
    #allocation8 [shape = 'u8[98304]{0}', space=vmem, size = 0x18000, scoped, tag = 'input window, operand 3, single buffered']
    #allocation9 [shape = 's32[1]{0}', space=sflag, size = 0x4, scoped, tag = 'scoped memory for tpu_custom_call.1']
    #allocation10 [shape = 'u8[98304]{0}', space=vmem, size = 0x18000, scoped, tag = 'input window, operand 4, single buffered']
    #allocation11 [shape = 'u8[4096]{0}', space=vmem, size = 0x1000, scoped, tag = 'output window, operand 0, single buffered']
    %16 = vsyncpa [#allocation6], 0
    %17 = vsyncpa [#allocation9], 0
    %18 = vsyncpa [#allocation7], 0
    // Predicated region
    $region2: #{tpu_custom_call.1} parent=1 // pred_check
      _
    $region3: #{tpu_custom_call.1} parent=1 // pred_check_branch
      %20 = sbr.rel (0) target = $region5
    $region4: #{tpu_custom_call.1} parent=1 // pred_region
      %s22 = ssub.s32 256, 256
      %23 = vsyncadd [#allocation6], %s22
      %s24 = sshll.u32 [#allocation5], 4
      %s25 = int_to_ptr.vmem [resolvable:$true] %s24
      %30 = dma.hbm_to_vmem [thread:$0]  %s1, 256, %s25, [#allocation6], 16, 16, 1
    $region5: #{tpu_custom_call.1} parent=1 // pred_fallthru
      _
    // Predicated region
    $region6: #{tpu_custom_call.1} parent=1 // pred_check
      _
    $region7: #{tpu_custom_call.1} parent=1 // pred_check_branch
      %32 = sbr.rel (0) target = $region9
    $region8: #{tpu_custom_call.1} parent=1 // pred_region
      _
    $region9: #{tpu_custom_call.1} parent=1 // pred_fallthru
      _
    // Predicated region
    $region10: #{tpu_custom_call.1} parent=1 // pred_check
      _
    $region11: #{tpu_custom_call.1} parent=1 // pred_check_branch
      %34 = sbr.rel (0) target = $region13
    $region12: #{tpu_custom_call.1} parent=1 // pred_region
      %s36 = ssub.s32 3072, 3072
      %37 = vsyncadd [#allocation9], %s36
      %s38 = sshll.u32 [#allocation8], 4
      %s39 = int_to_ptr.vmem [resolvable:$true] %s38
      %44 = dma.hbm_to_vmem [thread:$0]  %s3, 3072, %s39, [#allocation9], 192, 192, 12
    $region13: #{tpu_custom_call.1} parent=1 // pred_fallthru
      _
    // Predicated region
    $region14: #{tpu_custom_call.1} parent=1 // pred_check
      _
    $region15: #{tpu_custom_call.1} parent=1 // pred_check_branch
      %46 = sbr.rel (0) target = $region17
    $region16: #{tpu_custom_call.1} parent=1 // pred_region
      %s48 = ssub.s32 3072, 3072
      %49 = vsyncadd [#allocation9], %s48
      %s50 = sshll.u32 [#allocation10], 4
      %s51 = int_to_ptr.vmem [resolvable:$true] %s50
      %56 = dma.hbm_to_vmem [thread:$0]  %s4, 3072, %s51, [#allocation9], 192, 192, 12
    $region17: #{tpu_custom_call.1} parent=1 // pred_fallthru
      _
    // Predicated region
    $region18: #{tpu_custom_call.1} parent=1 // pred_check
      _
    $region19: #{tpu_custom_call.1} parent=1 // pred_check_branch
      %58 = sbr.rel (0) target = $region21
    $region20: #{tpu_custom_call.1} parent=1 // pred_region
      _
    $region21: #{tpu_custom_call.1} parent=1 // pred_fallthru
      _
    // Predicated region
    $region22: #{tpu_custom_call.1} parent=1 // pred_check
      _
    $region23: #{tpu_custom_call.1} parent=1 // pred_check_branch
      %60 = sbr.rel (0) target = $region25
    $region24: #{tpu_custom_call.1} parent=1 // pred_region
      _
    $region25: #{tpu_custom_call.1} parent=1 // pred_fallthru
      _
    // Predicated region
    $region26: #{tpu_custom_call.1} parent=1 // pred_check
      _
    $region27: #{tpu_custom_call.1} parent=1 // pred_check_branch
      %62 = sbr.rel (0) target = $region29
    $region28: #{tpu_custom_call.1} parent=1 // pred_region
      %63 = dma.done [#allocation6], 256
    $region29: #{tpu_custom_call.1} parent=1 // pred_fallthru
      _
    // Predicated region
    $region30: #{tpu_custom_call.1} parent=1 // pred_check
      _
    $region31: #{tpu_custom_call.1} parent=1 // pred_check_branch
      %65 = sbr.rel (0) target = $region33
    $region32: #{tpu_custom_call.1} parent=1 // pred_region
      %66 = dma.done [#allocation9], 3072
    $region33: #{tpu_custom_call.1} parent=1 // pred_fallthru
      _
    // Predicated region
    $region34: #{tpu_custom_call.1} parent=1 // pred_check
      _
    $region35: #{tpu_custom_call.1} parent=1 // pred_check_branch
      %68 = sbr.rel (0) target = $region37
    $region36: #{tpu_custom_call.1} parent=1 // pred_region
      %69 = dma.done [#allocation9], 3072
    $region37: #{tpu_custom_call.1} parent=1 // pred_fallthru
      _
    %s71 = sld [smem:[#allocation4]]
    %s72 = scalar_lea.vmem [#allocation5], %s71
    %v73 = vld [vmem:[%s72] sm:$0x1]
    %74 = vst [vmem:[#allocation2] sm:$0x1] %v73
    %s75 = sld [smem:[#allocation4 + $0x1]]
    %s76 = scalar_lea.vmem [#allocation5], %s75
    %v77 = vld [vmem:[%s76] sm:$0x1]
    %78 = vst [vmem:[#allocation2 + $0x1] sm:$0x1] %v77
    %s79 = sld [smem:[#allocation4 + $0x2]]
    %s80 = scalar_lea.vmem [#allocation5], %s79
    %v81 = vld [vmem:[%s80] sm:$0x1]
    %82 = vst [vmem:[#allocation2 + $0x2] sm:$0x1] %v81
    %s83 = sld [smem:[#allocation4 + $0x3]]
    %s84 = scalar_lea.vmem [#allocation5], %s83
    %v85 = vld [vmem:[%s84] sm:$0x1]
    %86 = vst [vmem:[#allocation2 + $0x3] sm:$0x1] %v85
    %s87 = sld [smem:[#allocation4 + $0x4]]
    %s88 = scalar_lea.vmem [#allocation5], %s87
    %v89 = vld [vmem:[%s88] sm:$0x1]
    %90 = vst [vmem:[#allocation2 + $0x4] sm:$0x1] %v89
    %s91 = sld [smem:[#allocation4 + $0x5]]
    %s92 = scalar_lea.vmem [#allocation5], %s91
    %v93 = vld [vmem:[%s92] sm:$0x1]
    %94 = vst [vmem:[#allocation2 + $0x5] sm:$0x1] %v93
    %s95 = sld [smem:[#allocation4 + $0x6]]
    %s96 = scalar_lea.vmem [#allocation5], %s95
    %v97 = vld [vmem:[%s96] sm:$0x1]
    %98 = vst [vmem:[#allocation2 + $0x6] sm:$0x1] %v97
    %s99 = sld [smem:[#allocation4 + $0x7]]
    %s100 = scalar_lea.vmem [#allocation5], %s99
    %v101 = vld [vmem:[%s100] sm:$0x1]
    %102 = vst [vmem:[#allocation2 + $0x7] sm:$0x1] %v101
    %v103 = vld [vmem:[#allocation2] sm:$0xff]
    %v104 = vpack.c.bf16 %v103, %v103
    %v105 = vld [vmem:[#allocation8] sm:$0xff]
    %v106 = vld [vmem:[#allocation8 + $0x8] sm:$0xf]
    %v107 = vld [vmem:[#allocation8 + $0xc] sm:$0xff]
    %v108 = vld [vmem:[#allocation8 + $0x14] sm:$0xf]
    %v109 = vld [vmem:[#allocation8 + $0x18] sm:$0xff]
    %v110 = vld [vmem:[#allocation8 + $0x20] sm:$0xf]
    %v111 = vld [vmem:[#allocation8 + $0x24] sm:$0xff]
    %v112 = vld [vmem:[#allocation8 + $0x2c] sm:$0xf]
    %v113 = vld [vmem:[#allocation8 + $0x30] sm:$0xff]
    %v114 = vld [vmem:[#allocation8 + $0x38] sm:$0xf]
    %v115 = vld [vmem:[#allocation8 + $0x3c] sm:$0xff]
    %v116 = vld [vmem:[#allocation8 + $0x44] sm:$0xf]
    %v117 = vld [vmem:[#allocation8 + $0x48] sm:$0xff]
    %v118 = vld [vmem:[#allocation8 + $0x50] sm:$0xf]
    %v119 = vld [vmem:[#allocation8 + $0x54] sm:$0xff]
    %v120 = vld [vmem:[#allocation8 + $0x5c] sm:$0xf]
    %v121 = vld [vmem:[#allocation8 + $0x60] sm:$0xff]
    %v122 = vld [vmem:[#allocation8 + $0x68] sm:$0xf]
    %v123 = vld [vmem:[#allocation8 + $0x6c] sm:$0xff]
    %v124 = vld [vmem:[#allocation8 + $0x74] sm:$0xf]
    %v125 = vld [vmem:[#allocation8 + $0x78] sm:$0xff]
    %v126 = vld [vmem:[#allocation8 + $0x80] sm:$0xf]
    %v127 = vld [vmem:[#allocation8 + $0x84] sm:$0xff]
    %v128 = vld [vmem:[#allocation8 + $0x8c] sm:$0xf]
    %v129 = vld [vmem:[#allocation8 + $0x90] sm:$0xff]
    %v130 = vld [vmem:[#allocation8 + $0x98] sm:$0xf]
    %v131 = vld [vmem:[#allocation8 + $0x9c] sm:$0xff]
    %v132 = vld [vmem:[#allocation8 + $0xa4] sm:$0xf]
    %v133 = vld [vmem:[#allocation8 + $0xa8] sm:$0xff]
    %v134 = vld [vmem:[#allocation8 + $0xb0] sm:$0xf]
    %v135 = vld [vmem:[#allocation8 + $0xb4] sm:$0xff]
    %v136 = vld [vmem:[#allocation8 + $0xbc] sm:$0xf]
    %v137 = vld [vmem:[%s5] sm:$0x7]
    %v139 = vlaneseq
    %v140 = vshrl.u32 %v139, 7
    %v141 = vsub.s32 0, %v140
    %v142 = vrot.slane %v137, %v141
    %v143 = vlaneseq
    %v144 = vshrl.u32 %v143, 7
    %v145 = vsub.s32 1, %v144
    %v146 = vrot.slane %v137, %v145
    %v147 = vlaneseq
    %v148 = vshrl.u32 %v147, 7
    %v149 = vsub.s32 2, %v148
    %v150 = vrot.slane %v137, %v149
    %v186 = vunpack.c.l.b16 %v105
    %v187 = vunpack.c.h.b16 %v105
    %v188 = vunpack.c.l.b16 %v106
    %v189 = vunpack.c.l.b16 %v107
    %v190 = vunpack.c.h.b16 %v107
    %v191 = vunpack.c.l.b16 %v108
    %v192 = vunpack.c.l.b16 %v109
    %v193 = vunpack.c.h.b16 %v109
    %v194 = vunpack.c.l.b16 %v110
    %v195 = vunpack.c.l.b16 %v111
    %v196 = vunpack.c.h.b16 %v111
    %v197 = vunpack.c.l.b16 %v112
    %v198 = vunpack.c.l.b16 %v113
    %v199 = vunpack.c.h.b16 %v113
    %v200 = vunpack.c.l.b16 %v114
    %v201 = vunpack.c.l.b16 %v115
    %v202 = vunpack.c.h.b16 %v115
    %v203 = vunpack.c.l.b16 %v116
    %v204 = vunpack.c.l.b16 %v117
    %v205 = vunpack.c.h.b16 %v117
    %v206 = vunpack.c.l.b16 %v118
    %v207 = vunpack.c.l.b16 %v119
    %v208 = vunpack.c.h.b16 %v119
    %v209 = vunpack.c.l.b16 %v120
    %v210 = vunpack.c.l.b16 %v121
    %v211 = vunpack.c.h.b16 %v121
    %v212 = vunpack.c.l.b16 %v122
    %v213 = vunpack.c.l.b16 %v123
    %v214 = vunpack.c.h.b16 %v123
    %v215 = vunpack.c.l.b16 %v124
    %v216 = vunpack.c.l.b16 %v125
    %v217 = vunpack.c.h.b16 %v125
    %v218 = vunpack.c.l.b16 %v126
    %v219 = vunpack.c.l.b16 %v127
    %v220 = vunpack.c.h.b16 %v127
    %v221 = vunpack.c.l.b16 %v128
    %v222 = vunpack.c.l.b16 %v129
    %v223 = vunpack.c.h.b16 %v129
    %v224 = vunpack.c.l.b16 %v130
    %v225 = vunpack.c.l.b16 %v131
    %v226 = vunpack.c.h.b16 %v131
    %v227 = vunpack.c.l.b16 %v132
    %v228 = vunpack.c.l.b16 %v133
    %v229 = vunpack.c.h.b16 %v133
    %v230 = vunpack.c.l.b16 %v134
    %v231 = vunpack.c.l.b16 %v135
    %v232 = vunpack.c.h.b16 %v135
    %v233 = vunpack.c.l.b16 %v136
    %v234 = vpack.c.b16 %v189, %v186
    %v235 = vpack.c.b16 %v190, %v187
    %v236 = vpack.c.b16 %v191, %v188
    %v237 = vpack.c.b16 %v195, %v192
    %v238 = vpack.c.b16 %v196, %v193
    %v239 = vpack.c.b16 %v197, %v194
    %v240 = vpack.c.b16 %v201, %v198
    %v241 = vpack.c.b16 %v202, %v199
    %v242 = vpack.c.b16 %v203, %v200
    %v243 = vpack.c.b16 %v207, %v204
    %v244 = vpack.c.b16 %v208, %v205
    %v245 = vpack.c.b16 %v209, %v206
    %v246 = vpack.c.b16 %v213, %v210
    %v247 = vpack.c.b16 %v214, %v211
    %v248 = vpack.c.b16 %v215, %v212
    %v249 = vpack.c.b16 %v219, %v216
    %v250 = vpack.c.b16 %v220, %v217
    %v251 = vpack.c.b16 %v221, %v218
    %v252 = vpack.c.b16 %v225, %v222
    %v253 = vpack.c.b16 %v226, %v223
    %v254 = vpack.c.b16 %v227, %v224
    %v255 = vpack.c.b16 %v231, %v228
    %v256 = vpack.c.b16 %v232, %v229
    %v257 = vpack.c.b16 %v233, %v230
    %282 = vmatprep.subr.bf16.mxu0 %v256
    %283 = vmatpush1.bf16.msra.mxu0 %v255
    %284 = vmatprep.subr.bf16.mxu0 %v253
    %285 = vmatpush1.bf16.msra.mxu0 %v252
    %286 = vmatprep.subr.bf16.mxu0 %v250
    %287 = vmatpush1.bf16.msra.mxu0 %v249
    %288 = vmatprep.subr.bf16.mxu0 %v247
    %289 = vmatpush1.bf16.msra.mxu0 %v246
    %290 = vmatprep.subr.bf16.mxu0 %v244
    %291 = vmatpush1.bf16.msra.mxu0 %v243
    %292 = vmatprep.subr.bf16.mxu0 %v241
    %293 = vmatpush1.bf16.msra.mxu0 %v240
    %294 = vmatprep.subr.bf16.mxu0 %v238
    %295 = vmatpush1.bf16.msra.mxu0 %v237
    %296 = vmatprep.subr.bf16.mxu0 %v235
    %297 = vmatpush1.bf16.msra.mxu0 %v234
    %298 = vmatprep.subr.bf16.mxu0 0
    %299 = vmatpush2.bf16.msra.mxu0 0
    %300 = vmatprep.subr.bf16.mxu0 0
    %301 = vmatpush2.bf16.msra.mxu0 0
    %302 = vmatprep.subr.bf16.mxu0 0
    %303 = vmatpush2.bf16.msra.mxu0 0
    %304 = vmatprep.subr.bf16.mxu0 0
    %305 = vmatpush2.bf16.msra.mxu0 0
    %306 = vmatprep.subr.bf16.mxu0 0
    %307 = vmatpush2.bf16.msra.mxu0 0
    %308 = vmatprep.subr.bf16.mxu0 0
    %309 = vmatpush2.bf16.msra.mxu0 0
    %310 = vmatprep.subr.bf16.mxu0 0
    %311 = vmatpush2.bf16.msra.mxu0 0
    %312 = vmatprep.subr.bf16.mxu0 0
    %313 = vmatpush2.bf16.msra.mxu0 0
    %314 = vmatprep.mubr.bf16.mxu0 0
    %315 = vmatmul.mubr.bf16.gmra.mxu0 %v104
    %v316 = vpop.f32.mrf.mxu0
    %v317 = vadd.f32 %v142, %v316
    %v318 = vpop.f32.mrf.mxu0
    %v319 = vadd.f32 %v146, %v318
    %v320 = vpop.f32.mrf.mxu0
    %v321 = vpop.f32.mrf.mxu0
    %322 = vdwg.mxu0
    %323 = vmatprep.subr.bf16.mxu0 0
    %324 = vmatpush1.bf16.msra.mxu0 %v257
    %325 = vmatprep.subr.bf16.mxu0 0
    %326 = vmatpush1.bf16.msra.mxu0 %v254
    %327 = vmatprep.subr.bf16.mxu0 0
    %328 = vmatpush1.bf16.msra.mxu0 %v251
    %329 = vmatprep.subr.bf16.mxu0 0
    %330 = vmatpush1.bf16.msra.mxu0 %v248
    %331 = vmatprep.subr.bf16.mxu0 0
    %332 = vmatpush1.bf16.msra.mxu0 %v245
    %333 = vmatprep.subr.bf16.mxu0 0
    %334 = vmatpush1.bf16.msra.mxu0 %v242
    %335 = vmatprep.subr.bf16.mxu0 0
    %336 = vmatpush1.bf16.msra.mxu0 %v239
    %337 = vmatprep.subr.bf16.mxu0 0
    %338 = vmatpush1.bf16.msra.mxu0 %v236
    %339 = vmatprep.subr.bf16.mxu0 0
    %340 = vmatpush2.bf16.msra.mxu0 0
    %341 = vmatprep.subr.bf16.mxu0 0
    %342 = vmatpush2.bf16.msra.mxu0 0
    %343 = vmatprep.subr.bf16.mxu0 0
    %344 = vmatpush2.bf16.msra.mxu0 0
    %345 = vmatprep.subr.bf16.mxu0 0
    %346 = vmatpush2.bf16.msra.mxu0 0
    %347 = vmatprep.subr.bf16.mxu0 0
    %348 = vmatpush2.bf16.msra.mxu0 0
    %349 = vmatprep.subr.bf16.mxu0 0
    %350 = vmatpush2.bf16.msra.mxu0 0
    %351 = vmatprep.subr.bf16.mxu0 0
    %352 = vmatpush2.bf16.msra.mxu0 0
    %353 = vmatprep.subr.bf16.mxu0 0
    %354 = vmatpush2.bf16.msra.mxu0 0
    %355 = vmatprep.mubr.bf16.mxu0 0
    %356 = vmatmul.mubr.bf16.gmra.mxu0 %v104
    %v357 = vpop.f32.mrf.mxu0
    %v358 = vadd.f32 %v150, %v357
    %v359 = vpop.f32.mrf.mxu0
    %v360 = vpop.f32.mrf.mxu0
    %v361 = vpop.f32.mrf.mxu0
    %362 = vdwg.mxu0
    %v363 = vld [vmem:[%s2] sm:$0x1]
    %v364 = vpack.c.bf16 %v363, %v363
    %v365 = vld [vmem:[#allocation10] sm:$0xff]
    %v366 = vld [vmem:[#allocation10 + $0x8] sm:$0xf]
    %v367 = vld [vmem:[#allocation10 + $0xc] sm:$0xff]
    %v368 = vld [vmem:[#allocation10 + $0x14] sm:$0xf]
    %v369 = vld [vmem:[#allocation10 + $0x18] sm:$0xff]
    %v370 = vld [vmem:[#allocation10 + $0x20] sm:$0xf]
    %v371 = vld [vmem:[#allocation10 + $0x24] sm:$0xff]
    %v372 = vld [vmem:[#allocation10 + $0x2c] sm:$0xf]
    %v373 = vld [vmem:[#allocation10 + $0x30] sm:$0xff]
    %v374 = vld [vmem:[#allocation10 + $0x38] sm:$0xf]
    %v375 = vld [vmem:[#allocation10 + $0x3c] sm:$0xff]
    %v376 = vld [vmem:[#allocation10 + $0x44] sm:$0xf]
    %v377 = vld [vmem:[#allocation10 + $0x48] sm:$0xff]
    %v378 = vld [vmem:[#allocation10 + $0x50] sm:$0xf]
    %v379 = vld [vmem:[#allocation10 + $0x54] sm:$0xff]
    %v380 = vld [vmem:[#allocation10 + $0x5c] sm:$0xf]
    %v381 = vld [vmem:[#allocation10 + $0x60] sm:$0xff]
    %v382 = vld [vmem:[#allocation10 + $0x68] sm:$0xf]
    %v383 = vld [vmem:[#allocation10 + $0x6c] sm:$0xff]
    %v384 = vld [vmem:[#allocation10 + $0x74] sm:$0xf]
    %v385 = vld [vmem:[#allocation10 + $0x78] sm:$0xff]
    %v386 = vld [vmem:[#allocation10 + $0x80] sm:$0xf]
    %v387 = vld [vmem:[#allocation10 + $0x84] sm:$0xff]
    %v388 = vld [vmem:[#allocation10 + $0x8c] sm:$0xf]
    %v389 = vld [vmem:[#allocation10 + $0x90] sm:$0xff]
    %v390 = vld [vmem:[#allocation10 + $0x98] sm:$0xf]
    %v391 = vld [vmem:[#allocation10 + $0x9c] sm:$0xff]
    %v392 = vld [vmem:[#allocation10 + $0xa4] sm:$0xf]
    %v393 = vld [vmem:[#allocation10 + $0xa8] sm:$0xff]
    %v394 = vld [vmem:[#allocation10 + $0xb0] sm:$0xf]
    %v395 = vld [vmem:[#allocation10 + $0xb4] sm:$0xff]
    %v396 = vld [vmem:[#allocation10 + $0xbc] sm:$0xf]
    %v397 = vld [vmem:[%s6] sm:$0x7]
    %v430 = vunpack.c.l.b16 %v365
    %v431 = vunpack.c.h.b16 %v365
    %v432 = vunpack.c.l.b16 %v366
    %v433 = vunpack.c.l.b16 %v367
    %v434 = vunpack.c.h.b16 %v367
    %v435 = vunpack.c.l.b16 %v368
    %v436 = vunpack.c.l.b16 %v369
    %v437 = vunpack.c.h.b16 %v369
    %v438 = vunpack.c.l.b16 %v370
    %v439 = vunpack.c.l.b16 %v371
    %v440 = vunpack.c.h.b16 %v371
    %v441 = vunpack.c.l.b16 %v372
    %v442 = vunpack.c.l.b16 %v373
    %v443 = vunpack.c.h.b16 %v373
    %v444 = vunpack.c.l.b16 %v374
    %v445 = vunpack.c.l.b16 %v375
    %v446 = vunpack.c.h.b16 %v375
    %v447 = vunpack.c.l.b16 %v376
    %v448 = vunpack.c.l.b16 %v377
    %v449 = vunpack.c.h.b16 %v377
    %v450 = vunpack.c.l.b16 %v378
    %v451 = vunpack.c.l.b16 %v379
    %v452 = vunpack.c.h.b16 %v379
    %v453 = vunpack.c.l.b16 %v380
    %v454 = vunpack.c.l.b16 %v381
    %v455 = vunpack.c.h.b16 %v381
    %v456 = vunpack.c.l.b16 %v382
    %v457 = vunpack.c.l.b16 %v383
    %v458 = vunpack.c.h.b16 %v383
    %v459 = vunpack.c.l.b16 %v384
    %v460 = vunpack.c.l.b16 %v385
    %v461 = vunpack.c.h.b16 %v385
    %v462 = vunpack.c.l.b16 %v386
    %v463 = vunpack.c.l.b16 %v387
    %v464 = vunpack.c.h.b16 %v387
    %v465 = vunpack.c.l.b16 %v388
    %v466 = vunpack.c.l.b16 %v389
    %v467 = vunpack.c.h.b16 %v389
    %v468 = vunpack.c.l.b16 %v390
    %v469 = vunpack.c.l.b16 %v391
    %v470 = vunpack.c.h.b16 %v391
    %v471 = vunpack.c.l.b16 %v392
    %v472 = vunpack.c.l.b16 %v393
    %v473 = vunpack.c.h.b16 %v393
    %v474 = vunpack.c.l.b16 %v394
    %v475 = vunpack.c.l.b16 %v395
    %v476 = vunpack.c.h.b16 %v395
    %v477 = vunpack.c.l.b16 %v396
    %v478 = vpack.c.b16 %v433, %v430
    %v479 = vpack.c.b16 %v434, %v431
    %v480 = vpack.c.b16 %v435, %v432
    %v481 = vpack.c.b16 %v439, %v436
    %v482 = vpack.c.b16 %v440, %v437
    %v483 = vpack.c.b16 %v441, %v438
    %v484 = vpack.c.b16 %v445, %v442
    %v485 = vpack.c.b16 %v446, %v443
    %v486 = vpack.c.b16 %v447, %v444
    %v487 = vpack.c.b16 %v451, %v448
    %v488 = vpack.c.b16 %v452, %v449
    %v489 = vpack.c.b16 %v453, %v450
    %v490 = vpack.c.b16 %v457, %v454
    %v491 = vpack.c.b16 %v458, %v455
    %v492 = vpack.c.b16 %v459, %v456
    %v493 = vpack.c.b16 %v463, %v460
    %v494 = vpack.c.b16 %v464, %v461
    %v495 = vpack.c.b16 %v465, %v462
    %v496 = vpack.c.b16 %v469, %v466
    %v497 = vpack.c.b16 %v470, %v467
    %v498 = vpack.c.b16 %v471, %v468
    %v499 = vpack.c.b16 %v475, %v472
    %v500 = vpack.c.b16 %v476, %v473
    %v501 = vpack.c.b16 %v477, %v474
    %v527 = vlaneseq
    %v528 = vshrl.u32 %v527, 7
    %v529 = vsub.s32 0, %v528
    %v530 = vrot.slane %v397, %v529
    %v531 = vlaneseq
    %v532 = vshrl.u32 %v531, 7
    %v533 = vsub.s32 1, %v532
    %v534 = vrot.slane %v397, %v533
    %v535 = vlaneseq
    %v536 = vshrl.u32 %v535, 7
    %v537 = vsub.s32 2, %v536
    %v538 = vrot.slane %v397, %v537
    %542 = vmatprep.subr.bf16.mxu0 %v500
    %543 = vmatpush1.bf16.msra.mxu0 %v499
    %544 = vmatprep.subr.bf16.mxu0 %v497
    %545 = vmatpush1.bf16.msra.mxu0 %v496
    %546 = vmatprep.subr.bf16.mxu0 %v494
    %547 = vmatpush1.bf16.msra.mxu0 %v493
    %548 = vmatprep.subr.bf16.mxu0 %v491
    %549 = vmatpush1.bf16.msra.mxu0 %v490
    %550 = vmatprep.subr.bf16.mxu0 %v488
    %551 = vmatpush1.bf16.msra.mxu0 %v487
    %552 = vmatprep.subr.bf16.mxu0 %v485
    %553 = vmatpush1.bf16.msra.mxu0 %v484
    %554 = vmatprep.subr.bf16.mxu0 %v482
    %555 = vmatpush1.bf16.msra.mxu0 %v481
    %556 = vmatprep.subr.bf16.mxu0 %v479
    %557 = vmatpush1.bf16.msra.mxu0 %v478
    %558 = vmatprep.subr.bf16.mxu0 0
    %559 = vmatpush2.bf16.msra.mxu0 0
    %560 = vmatprep.subr.bf16.mxu0 0
    %561 = vmatpush2.bf16.msra.mxu0 0
    %562 = vmatprep.subr.bf16.mxu0 0
    %563 = vmatpush2.bf16.msra.mxu0 0
    %564 = vmatprep.subr.bf16.mxu0 0
    %565 = vmatpush2.bf16.msra.mxu0 0
    %566 = vmatprep.subr.bf16.mxu0 0
    %567 = vmatpush2.bf16.msra.mxu0 0
    %568 = vmatprep.subr.bf16.mxu0 0
    %569 = vmatpush2.bf16.msra.mxu0 0
    %570 = vmatprep.subr.bf16.mxu0 0
    %571 = vmatpush2.bf16.msra.mxu0 0
    %572 = vmatprep.subr.bf16.mxu0 0
    %573 = vmatpush2.bf16.msra.mxu0 0
    %574 = vmatprep.mubr.bf16.mxu0 0
    %575 = vmatmul.mubr.bf16.gmra.mxu0 %v364
    %v576 = vpop.f32.mrf.mxu0
    %v577 = vadd.f32 %v530, %v576
    %v578 = vpop.f32.mrf.mxu0
    %v579 = vadd.f32 %v534, %v578
    %v580 = vpop.f32.mrf.mxu0
    %v581 = vpop.f32.mrf.mxu0
    %582 = vdwg.mxu0
    %583 = vmatprep.subr.bf16.mxu0 0
    %584 = vmatpush1.bf16.msra.mxu0 %v501
    %585 = vmatprep.subr.bf16.mxu0 0
    %586 = vmatpush1.bf16.msra.mxu0 %v498
    %587 = vmatprep.subr.bf16.mxu0 0
    %588 = vmatpush1.bf16.msra.mxu0 %v495
    %589 = vmatprep.subr.bf16.mxu0 0
    %590 = vmatpush1.bf16.msra.mxu0 %v492
    %591 = vmatprep.subr.bf16.mxu0 0
    %592 = vmatpush1.bf16.msra.mxu0 %v489
    %593 = vmatprep.subr.bf16.mxu0 0
    %594 = vmatpush1.bf16.msra.mxu0 %v486
    %595 = vmatprep.subr.bf16.mxu0 0
    %596 = vmatpush1.bf16.msra.mxu0 %v483
    %597 = vmatprep.subr.bf16.mxu0 0
    %598 = vmatpush1.bf16.msra.mxu0 %v480
    %599 = vmatprep.subr.bf16.mxu0 0
    %600 = vmatpush2.bf16.msra.mxu0 0
    %601 = vmatprep.subr.bf16.mxu0 0
    %602 = vmatpush2.bf16.msra.mxu0 0
    %603 = vmatprep.subr.bf16.mxu0 0
    %604 = vmatpush2.bf16.msra.mxu0 0
    %605 = vmatprep.subr.bf16.mxu0 0
    %606 = vmatpush2.bf16.msra.mxu0 0
    %607 = vmatprep.subr.bf16.mxu0 0
    %608 = vmatpush2.bf16.msra.mxu0 0
    %609 = vmatprep.subr.bf16.mxu0 0
    %610 = vmatpush2.bf16.msra.mxu0 0
    %611 = vmatprep.subr.bf16.mxu0 0
    %612 = vmatpush2.bf16.msra.mxu0 0
    %613 = vmatprep.subr.bf16.mxu0 0
    %614 = vmatpush2.bf16.msra.mxu0 0
    %615 = vmatprep.mubr.bf16.mxu0 0
    %616 = vmatmul.mubr.bf16.gmra.mxu0 %v364
    %v617 = vpop.f32.mrf.mxu0
    %v618 = vadd.f32 %v538, %v617
    %v619 = vpop.f32.mrf.mxu0
    %v620 = vpop.f32.mrf.mxu0
    %v621 = vpop.f32.mrf.mxu0
    %622 = vdwg.mxu0
    %v623 = vadd.f32 %v317, %v577
    %v624 = vxor.u32 %v623, 2147483648
    %v625 = vmul.f32 %v624, 1.442695
    %v626 = vpow.pop %v625
    %v627 = vadd.f32 %v626, 1.0
    %v628 = vrcp.pop %v627
    %v629 = vmul.f32 1.0, %v628
    %v630 = vadd.f32 %v319, %v579
    %v631 = vxor.u32 %v630, 2147483648
    %v632 = vmul.f32 %v631, 1.442695
    %v633 = vpow.pop %v632
    %v634 = vadd.f32 %v633, 1.0
    %v635 = vrcp.pop %v634
    %v636 = vmul.f32 1.0, %v635
    %v637 = vmul.f32 %v629, %v618
    %v638 = vadd.f32 %v358, %v637
    %v639 = vtanh.pop %v638
    %v640 = vsub.f32 1.0, %v636
    %v641 = vmul.f32 %v640, %v639
    %v642 = vmul.f32 %v636, %v363
    %v643 = vadd.f32 %v641, %v642
    %644 = vst [vmem:[#allocation11] sm:$0x1] %v643
    %v645 = vpack.c.bf16 %v643, %v643
    %v646 = vld [vmem:[#allocation10] sm:$0xff]
    %v647 = vld [vmem:[#allocation10 + $0x8] sm:$0xf]
    %v648 = vld [vmem:[#allocation10 + $0xc] sm:$0xff]
    %v649 = vld [vmem:[#allocation10 + $0x14] sm:$0xf]
    %v650 = vld [vmem:[#allocation10 + $0x18] sm:$0xff]
    %v651 = vld [vmem:[#allocation10 + $0x20] sm:$0xf]
    %v652 = vld [vmem:[#allocation10 + $0x24] sm:$0xff]
    %v653 = vld [vmem:[#allocation10 + $0x2c] sm:$0xf]
    %v654 = vld [vmem:[#allocation10 + $0x30] sm:$0xff]
    %v655 = vld [vmem:[#allocation10 + $0x38] sm:$0xf]
    %v656 = vld [vmem:[#allocation10 + $0x3c] sm:$0xff]
    %v657 = vld [vmem:[#allocation10 + $0x44] sm:$0xf]
    %v658 = vld [vmem:[#allocation10 + $0x48] sm:$0xff]
    %v659 = vld [vmem:[#allocation10 + $0x50] sm:$0xf]
    %v660 = vld [vmem:[#allocation10 + $0x54] sm:$0xff]
    %v661 = vld [vmem:[#allocation10 + $0x5c] sm:$0xf]
    %v662 = vld [vmem:[#allocation10 + $0x60] sm:$0xff]
    %v663 = vld [vmem:[#allocation10 + $0x68] sm:$0xf]
    %v664 = vld [vmem:[#allocation10 + $0x6c] sm:$0xff]
    %v665 = vld [vmem:[#allocation10 + $0x74] sm:$0xf]
    %v666 = vld [vmem:[#allocation10 + $0x78] sm:$0xff]
    %v667 = vld [vmem:[#allocation10 + $0x80] sm:$0xf]
    %v668 = vld [vmem:[#allocation10 + $0x84] sm:$0xff]
    %v669 = vld [vmem:[#allocation10 + $0x8c] sm:$0xf]
    %v670 = vld [vmem:[#allocation10 + $0x90] sm:$0xff]
    %v671 = vld [vmem:[#allocation10 + $0x98] sm:$0xf]
    %v672 = vld [vmem:[#allocation10 + $0x9c] sm:$0xff]
    %v673 = vld [vmem:[#allocation10 + $0xa4] sm:$0xf]
    %v674 = vld [vmem:[#allocation10 + $0xa8] sm:$0xff]
    %v675 = vld [vmem:[#allocation10 + $0xb0] sm:$0xf]
    %v676 = vld [vmem:[#allocation10 + $0xb4] sm:$0xff]
    %v677 = vld [vmem:[#allocation10 + $0xbc] sm:$0xf]
    %v678 = vld [vmem:[%s6] sm:$0x7]
    %v711 = vunpack.c.l.b16 %v646
    %v712 = vunpack.c.h.b16 %v646
    %v713 = vunpack.c.l.b16 %v647
    %v714 = vunpack.c.l.b16 %v648
    %v715 = vunpack.c.h.b16 %v648
    %v716 = vunpack.c.l.b16 %v649
    %v717 = vunpack.c.l.b16 %v650
    %v718 = vunpack.c.h.b16 %v650
    %v719 = vunpack.c.l.b16 %v651
    %v720 = vunpack.c.l.b16 %v652
    %v721 = vunpack.c.h.b16 %v652
    %v722 = vunpack.c.l.b16 %v653
    %v723 = vunpack.c.l.b16 %v654
    %v724 = vunpack.c.h.b16 %v654
    %v725 = vunpack.c.l.b16 %v655
    %v726 = vunpack.c.l.b16 %v656
    %v727 = vunpack.c.h.b16 %v656
    %v728 = vunpack.c.l.b16 %v657
    %v729 = vunpack.c.l.b16 %v658
    %v730 = vunpack.c.h.b16 %v658
    %v731 = vunpack.c.l.b16 %v659
    %v732 = vunpack.c.l.b16 %v660
    %v733 = vunpack.c.h.b16 %v660
    %v734 = vunpack.c.l.b16 %v661
    %v735 = vunpack.c.l.b16 %v662
    %v736 = vunpack.c.h.b16 %v662
    %v737 = vunpack.c.l.b16 %v663
    %v738 = vunpack.c.l.b16 %v664
    %v739 = vunpack.c.h.b16 %v664
    %v740 = vunpack.c.l.b16 %v665
    %v741 = vunpack.c.l.b16 %v666
    %v742 = vunpack.c.h.b16 %v666
    %v743 = vunpack.c.l.b16 %v667
    %v744 = vunpack.c.l.b16 %v668
    %v745 = vunpack.c.h.b16 %v668
    %v746 = vunpack.c.l.b16 %v669
    %v747 = vunpack.c.l.b16 %v670
    %v748 = vunpack.c.h.b16 %v670
    %v749 = vunpack.c.l.b16 %v671
    %v750 = vunpack.c.l.b16 %v672
    %v751 = vunpack.c.h.b16 %v672
    %v752 = vunpack.c.l.b16 %v673
    %v753 = vunpack.c.l.b16 %v674
    %v754 = vunpack.c.h.b16 %v674
    %v755 = vunpack.c.l.b16 %v675
    %v756 = vunpack.c.l.b16 %v676
    %v757 = vunpack.c.h.b16 %v676
    %v758 = vunpack.c.l.b16 %v677
    %v759 = vpack.c.b16 %v714, %v711
    %v760 = vpack.c.b16 %v715, %v712
    %v761 = vpack.c.b16 %v716, %v713
    %v762 = vpack.c.b16 %v720, %v717
    %v763 = vpack.c.b16 %v721, %v718
    %v764 = vpack.c.b16 %v722, %v719
    %v765 = vpack.c.b16 %v726, %v723
    %v766 = vpack.c.b16 %v727, %v724
    %v767 = vpack.c.b16 %v728, %v725
    %v768 = vpack.c.b16 %v732, %v729
    %v769 = vpack.c.b16 %v733, %v730
    %v770 = vpack.c.b16 %v734, %v731
    %v771 = vpack.c.b16 %v738, %v735
    %v772 = vpack.c.b16 %v739, %v736
    %v773 = vpack.c.b16 %v740, %v737
    %v774 = vpack.c.b16 %v744, %v741
    %v775 = vpack.c.b16 %v745, %v742
    %v776 = vpack.c.b16 %v746, %v743
    %v777 = vpack.c.b16 %v750, %v747
    %v778 = vpack.c.b16 %v751, %v748
    %v779 = vpack.c.b16 %v752, %v749
    %v780 = vpack.c.b16 %v756, %v753
    %v781 = vpack.c.b16 %v757, %v754
    %v782 = vpack.c.b16 %v758, %v755
    %v808 = vlaneseq
    %v809 = vshrl.u32 %v808, 7
    %v810 = vsub.s32 0, %v809
    %v811 = vrot.slane %v678, %v810
    %v812 = vlaneseq
    %v813 = vshrl.u32 %v812, 7
    %v814 = vsub.s32 1, %v813
    %v815 = vrot.slane %v678, %v814
    %v816 = vlaneseq
    %v817 = vshrl.u32 %v816, 7
    %v818 = vsub.s32 2, %v817
    %v819 = vrot.slane %v678, %v818
    %823 = vmatprep.subr.bf16.mxu0 %v781
    %824 = vmatpush1.bf16.msra.mxu0 %v780
    %825 = vmatprep.subr.bf16.mxu0 %v778
    %826 = vmatpush1.bf16.msra.mxu0 %v777
    %827 = vmatprep.subr.bf16.mxu0 %v775
    %828 = vmatpush1.bf16.msra.mxu0 %v774
    %829 = vmatprep.subr.bf16.mxu0 %v772
    %830 = vmatpush1.bf16.msra.mxu0 %v771
    %831 = vmatprep.subr.bf16.mxu0 %v769
    %832 = vmatpush1.bf16.msra.mxu0 %v768
    %833 = vmatprep.subr.bf16.mxu0 %v766
    %834 = vmatpush1.bf16.msra.mxu0 %v765
    %835 = vmatprep.subr.bf16.mxu0 %v763
    %836 = vmatpush1.bf16.msra.mxu0 %v762
    %837 = vmatprep.subr.bf16.mxu0 %v760
    %838 = vmatpush1.bf16.msra.mxu0 %v759
    %839 = vmatprep.subr.bf16.mxu0 0
    %840 = vmatpush2.bf16.msra.mxu0 0
    %841 = vmatprep.subr.bf16.mxu0 0
    %842 = vmatpush2.bf16.msra.mxu0 0
    %843 = vmatprep.subr.bf16.mxu0 0
    %844 = vmatpush2.bf16.msra.mxu0 0
    %845 = vmatprep.subr.bf16.mxu0 0
    %846 = vmatpush2.bf16.msra.mxu0 0
    %847 = vmatprep.subr.bf16.mxu0 0
    %848 = vmatpush2.bf16.msra.mxu0 0
    %849 = vmatprep.subr.bf16.mxu0 0
    %850 = vmatpush2.bf16.msra.mxu0 0
    %851 = vmatprep.subr.bf16.mxu0 0
    %852 = vmatpush2.bf16.msra.mxu0 0
    %853 = vmatprep.subr.bf16.mxu0 0
    %854 = vmatpush2.bf16.msra.mxu0 0
    %855 = vmatprep.mubr.bf16.mxu0 0
    %856 = vmatmul.mubr.bf16.gmra.mxu0 %v645
    %v857 = vpop.f32.mrf.mxu0
    %v858 = vadd.f32 %v811, %v857
    %v859 = vpop.f32.mrf.mxu0
    %v860 = vadd.f32 %v815, %v859
    %v861 = vpop.f32.mrf.mxu0
    %v862 = vpop.f32.mrf.mxu0
    %863 = vdwg.mxu0
    %864 = vmatprep.subr.bf16.mxu0 0
    %865 = vmatpush1.bf16.msra.mxu0 %v782
    %866 = vmatprep.subr.bf16.mxu0 0
    %867 = vmatpush1.bf16.msra.mxu0 %v779
    %868 = vmatprep.subr.bf16.mxu0 0
    %869 = vmatpush1.bf16.msra.mxu0 %v776
    %870 = vmatprep.subr.bf16.mxu0 0
    %871 = vmatpush1.bf16.msra.mxu0 %v773
    %872 = vmatprep.subr.bf16.mxu0 0
    %873 = vmatpush1.bf16.msra.mxu0 %v770
    %874 = vmatprep.subr.bf16.mxu0 0
    %875 = vmatpush1.bf16.msra.mxu0 %v767
    %876 = vmatprep.subr.bf16.mxu0 0
    %877 = vmatpush1.bf16.msra.mxu0 %v764
    %878 = vmatprep.subr.bf16.mxu0 0
    %879 = vmatpush1.bf16.msra.mxu0 %v761
    %880 = vmatprep.subr.bf16.mxu0 0
    %881 = vmatpush2.bf16.msra.mxu0 0
    %882 = vmatprep.subr.bf16.mxu0 0
    %883 = vmatpush2.bf16.msra.mxu0 0
    %884 = vmatprep.subr.bf16.mxu0 0
    %885 = vmatpush2.bf16.msra.mxu0 0
    %886 = vmatprep.subr.bf16.mxu0 0
    %887 = vmatpush2.bf16.msra.mxu0 0
    %888 = vmatprep.subr.bf16.mxu0 0
    %889 = vmatpush2.bf16.msra.mxu0 0
    %890 = vmatprep.subr.bf16.mxu0 0
    %891 = vmatpush2.bf16.msra.mxu0 0
    %892 = vmatprep.subr.bf16.mxu0 0
    %893 = vmatpush2.bf16.msra.mxu0 0
    %894 = vmatprep.subr.bf16.mxu0 0
    %895 = vmatpush2.bf16.msra.mxu0 0
    %896 = vmatprep.mubr.bf16.mxu0 0
    %897 = vmatmul.mubr.bf16.gmra.mxu0 %v645
    %v898 = vpop.f32.mrf.mxu0
    %v899 = vadd.f32 %v819, %v898
    %v900 = vpop.f32.mrf.mxu0
    %v901 = vpop.f32.mrf.mxu0
    %v902 = vpop.f32.mrf.mxu0
    %903 = vdwg.mxu0
    %v905 = vrot.slane %v858, 7
    %v907 = vadd.f32 %v317, %v905
    %v908 = vxor.u32 %v907, 2147483648
    %v909 = vmul.f32 %v908, 1.442695
    %v910 = vpow.pop %v909
    %v911 = vadd.f32 %v910, 1.0
    %v912 = vrcp.pop %v911
    %v913 = vmul.f32 1.0, %v912
    %v915 = vrot.slane %v860, 7
    %v917 = vadd.f32 %v319, %v915
    %v918 = vxor.u32 %v917, 2147483648
    %v919 = vmul.f32 %v918, 1.442695
    %v920 = vpow.pop %v919
    %v921 = vadd.f32 %v920, 1.0
    %v922 = vrcp.pop %v921
    %v923 = vmul.f32 1.0, %v922
    %v925 = vrot.slane %v899, 7
    %v927 = vmul.f32 %v913, %v925
    %v928 = vadd.f32 %v358, %v927
    %v929 = vtanh.pop %v928
    %v930 = vsub.f32 1.0, %v923
    %v931 = vmul.f32 %v930, %v929
    %v933 = vrot.slane %v643, 7
    %v935 = vmul.f32 %v923, %v933
    %v936 = vadd.f32 %v931, %v935
    %937 = vst [vmem:[#allocation11] sm:$0x2] %v936
    %v938 = vpack.c.bf16 %v936, %v936
    %v939 = vld [vmem:[#allocation10] sm:$0xff]
    %v940 = vld [vmem:[#allocation10 + $0x8] sm:$0xf]
    %v941 = vld [vmem:[#allocation10 + $0xc] sm:$0xff]
    %v942 = vld [vmem:[#allocation10 + $0x14] sm:$0xf]
    %v943 = vld [vmem:[#allocation10 + $0x18] sm:$0xff]
    %v944 = vld [vmem:[#allocation10 + $0x20] sm:$0xf]
    %v945 = vld [vmem:[#allocation10 + $0x24] sm:$0xff]
    %v946 = vld [vmem:[#allocation10 + $0x2c] sm:$0xf]
    %v947 = vld [vmem:[#allocation10 + $0x30] sm:$0xff]
    %v948 = vld [vmem:[#allocation10 + $0x38] sm:$0xf]
    %v949 = vld [vmem:[#allocation10 + $0x3c] sm:$0xff]
    %v950 = vld [vmem:[#allocation10 + $0x44] sm:$0xf]
    %v951 = vld [vmem:[#allocation10 + $0x48] sm:$0xff]
    %v952 = vld [vmem:[#allocation10 + $0x50] sm:$0xf]
    %v953 = vld [vmem:[#allocation10 + $0x54] sm:$0xff]
    %v954 = vld [vmem:[#allocation10 + $0x5c] sm:$0xf]
    %v955 = vld [vmem:[#allocation10 + $0x60] sm:$0xff]
    %v956 = vld [vmem:[#allocation10 + $0x68] sm:$0xf]
    %v957 = vld [vmem:[#allocation10 + $0x6c] sm:$0xff]
    %v958 = vld [vmem:[#allocation10 + $0x74] sm:$0xf]
    %v959 = vld [vmem:[#allocation10 + $0x78] sm:$0xff]
    %v960 = vld [vmem:[#allocation10 + $0x80] sm:$0xf]
    %v961 = vld [vmem:[#allocation10 + $0x84] sm:$0xff]
    %v962 = vld [vmem:[#allocation10 + $0x8c] sm:$0xf]
    %v963 = vld [vmem:[#allocation10 + $0x90] sm:$0xff]
    %v964 = vld [vmem:[#allocation10 + $0x98] sm:$0xf]
    %v965 = vld [vmem:[#allocation10 + $0x9c] sm:$0xff]
    %v966 = vld [vmem:[#allocation10 + $0xa4] sm:$0xf]
    %v967 = vld [vmem:[#allocation10 + $0xa8] sm:$0xff]
    %v968 = vld [vmem:[#allocation10 + $0xb0] sm:$0xf]
    %v969 = vld [vmem:[#allocation10 + $0xb4] sm:$0xff]
    %v970 = vld [vmem:[#allocation10 + $0xbc] sm:$0xf]
    %v971 = vld [vmem:[%s6] sm:$0x7]
    %v973 = vshrl.u32 %v938, 16
    %v1008 = vunpack.c.l.b16 %v939
    %v1009 = vunpack.c.h.b16 %v939
    %v1010 = vunpack.c.l.b16 %v940
    %v1011 = vunpack.c.l.b16 %v941
    %v1012 = vunpack.c.h.b16 %v941
    %v1013 = vunpack.c.l.b16 %v942
    %v1014 = vunpack.c.l.b16 %v943
    %v1015 = vunpack.c.h.b16 %v943
    %v1016 = vunpack.c.l.b16 %v944
    %v1017 = vunpack.c.l.b16 %v945
    %v1018 = vunpack.c.h.b16 %v945
    %v1019 = vunpack.c.l.b16 %v946
    %v1020 = vunpack.c.l.b16 %v947
    %v1021 = vunpack.c.h.b16 %v947
    %v1022 = vunpack.c.l.b16 %v948
    %v1023 = vunpack.c.l.b16 %v949
    %v1024 = vunpack.c.h.b16 %v949
    %v1025 = vunpack.c.l.b16 %v950
    %v1026 = vunpack.c.l.b16 %v951
    %v1027 = vunpack.c.h.b16 %v951
    %v1028 = vunpack.c.l.b16 %v952
    %v1029 = vunpack.c.l.b16 %v953
    %v1030 = vunpack.c.h.b16 %v953
    %v1031 = vunpack.c.l.b16 %v954
    %v1032 = vunpack.c.l.b16 %v955
    %v1033 = vunpack.c.h.b16 %v955
    %v1034 = vunpack.c.l.b16 %v956
    %v1035 = vunpack.c.l.b16 %v957
    %v1036 = vunpack.c.h.b16 %v957
    %v1037 = vunpack.c.l.b16 %v958
    %v1038 = vunpack.c.l.b16 %v959
    %v1039 = vunpack.c.h.b16 %v959
    %v1040 = vunpack.c.l.b16 %v960
    %v1041 = vunpack.c.l.b16 %v961
    %v1042 = vunpack.c.h.b16 %v961
    %v1043 = vunpack.c.l.b16 %v962
    %v1044 = vunpack.c.l.b16 %v963
    %v1045 = vunpack.c.h.b16 %v963
    %v1046 = vunpack.c.l.b16 %v964
    %v1047 = vunpack.c.l.b16 %v965
    %v1048 = vunpack.c.h.b16 %v965
    %v1049 = vunpack.c.l.b16 %v966
    %v1050 = vunpack.c.l.b16 %v967
    %v1051 = vunpack.c.h.b16 %v967
    %v1052 = vunpack.c.l.b16 %v968
    %v1053 = vunpack.c.l.b16 %v969
    %v1054 = vunpack.c.h.b16 %v969
    %v1055 = vunpack.c.l.b16 %v970
    %v1056 = vpack.c.b16 %v1011, %v1008
    %v1057 = vpack.c.b16 %v1012, %v1009
    %v1058 = vpack.c.b16 %v1013, %v1010
    %v1059 = vpack.c.b16 %v1017, %v1014
    %v1060 = vpack.c.b16 %v1018, %v1015
    %v1061 = vpack.c.b16 %v1019, %v1016
    %v1062 = vpack.c.b16 %v1023, %v1020
    %v1063 = vpack.c.b16 %v1024, %v1021
    %v1064 = vpack.c.b16 %v1025, %v1022
    %v1065 = vpack.c.b16 %v1029, %v1026
    %v1066 = vpack.c.b16 %v1030, %v1027
    %v1067 = vpack.c.b16 %v1031, %v1028
    %v1068 = vpack.c.b16 %v1035, %v1032
    %v1069 = vpack.c.b16 %v1036, %v1033
    %v1070 = vpack.c.b16 %v1037, %v1034
    %v1071 = vpack.c.b16 %v1041, %v1038
    %v1072 = vpack.c.b16 %v1042, %v1039
    %v1073 = vpack.c.b16 %v1043, %v1040
    %v1074 = vpack.c.b16 %v1047, %v1044
    %v1075 = vpack.c.b16 %v1048, %v1045
    %v1076 = vpack.c.b16 %v1049, %v1046
    %v1077 = vpack.c.b16 %v1053, %v1050
    %v1078 = vpack.c.b16 %v1054, %v1051
    %v1079 = vpack.c.b16 %v1055, %v1052
    %v1105 = vlaneseq
    %v1106 = vshrl.u32 %v1105, 7
    %v1107 = vsub.s32 0, %v1106
    %v1108 = vrot.slane %v971, %v1107
    %v1109 = vlaneseq
    %v1110 = vshrl.u32 %v1109, 7
    %v1111 = vsub.s32 1, %v1110
    %v1112 = vrot.slane %v971, %v1111
    %v1113 = vlaneseq
    %v1114 = vshrl.u32 %v1113, 7
    %v1115 = vsub.s32 2, %v1114
    %v1116 = vrot.slane %v971, %v1115
    %1120 = vmatprep.subr.bf16.mxu0 %v1078
    %1121 = vmatpush1.bf16.msra.mxu0 %v1077
    %1122 = vmatprep.subr.bf16.mxu0 %v1075
    %1123 = vmatpush1.bf16.msra.mxu0 %v1074
    %1124 = vmatprep.subr.bf16.mxu0 %v1072
    %1125 = vmatpush1.bf16.msra.mxu0 %v1071
    %1126 = vmatprep.subr.bf16.mxu0 %v1069
    %1127 = vmatpush1.bf16.msra.mxu0 %v1068
    %1128 = vmatprep.subr.bf16.mxu0 %v1066
    %1129 = vmatpush1.bf16.msra.mxu0 %v1065
    %1130 = vmatprep.subr.bf16.mxu0 %v1063
    %1131 = vmatpush1.bf16.msra.mxu0 %v1062
    %1132 = vmatprep.subr.bf16.mxu0 %v1060
    %1133 = vmatpush1.bf16.msra.mxu0 %v1059
    %1134 = vmatprep.subr.bf16.mxu0 %v1057
    %1135 = vmatpush1.bf16.msra.mxu0 %v1056
    %1136 = vmatprep.subr.bf16.mxu0 0
    %1137 = vmatpush2.bf16.msra.mxu0 0
    %1138 = vmatprep.subr.bf16.mxu0 0
    %1139 = vmatpush2.bf16.msra.mxu0 0
    %1140 = vmatprep.subr.bf16.mxu0 0
    %1141 = vmatpush2.bf16.msra.mxu0 0
    %1142 = vmatprep.subr.bf16.mxu0 0
    %1143 = vmatpush2.bf16.msra.mxu0 0
    %1144 = vmatprep.subr.bf16.mxu0 0
    %1145 = vmatpush2.bf16.msra.mxu0 0
    %1146 = vmatprep.subr.bf16.mxu0 0
    %1147 = vmatpush2.bf16.msra.mxu0 0
    %1148 = vmatprep.subr.bf16.mxu0 0
    %1149 = vmatpush2.bf16.msra.mxu0 0
    %1150 = vmatprep.subr.bf16.mxu0 0
    %1151 = vmatpush2.bf16.msra.mxu0 0
    %1152 = vmatprep.mubr.bf16.mxu0 0
    %1153 = vmatmul.mubr.bf16.gmra.mxu0 %v973
    %v1154 = vpop.f32.mrf.mxu0
    %v1155 = vadd.f32 %v1108, %v1154
    %v1156 = vpop.f32.mrf.mxu0
    %v1157 = vadd.f32 %v1112, %v1156
    %v1158 = vpop.f32.mrf.mxu0
    %v1159 = vpop.f32.mrf.mxu0
    %1160 = vdwg.mxu0
    %1161 = vmatprep.subr.bf16.mxu0 0
    %1162 = vmatpush1.bf16.msra.mxu0 %v1079
    %1163 = vmatprep.subr.bf16.mxu0 0
    %1164 = vmatpush1.bf16.msra.mxu0 %v1076
    %1165 = vmatprep.subr.bf16.mxu0 0
    %1166 = vmatpush1.bf16.msra.mxu0 %v1073
    %1167 = vmatprep.subr.bf16.mxu0 0
    %1168 = vmatpush1.bf16.msra.mxu0 %v1070
    %1169 = vmatprep.subr.bf16.mxu0 0
    %1170 = vmatpush1.bf16.msra.mxu0 %v1067
    %1171 = vmatprep.subr.bf16.mxu0 0
    %1172 = vmatpush1.bf16.msra.mxu0 %v1064
    %1173 = vmatprep.subr.bf16.mxu0 0
    %1174 = vmatpush1.bf16.msra.mxu0 %v1061
    %1175 = vmatprep.subr.bf16.mxu0 0
    %1176 = vmatpush1.bf16.msra.mxu0 %v1058
    %1177 = vmatprep.subr.bf16.mxu0 0
    %1178 = vmatpush2.bf16.msra.mxu0 0
    %1179 = vmatprep.subr.bf16.mxu0 0
    %1180 = vmatpush2.bf16.msra.mxu0 0
    %1181 = vmatprep.subr.bf16.mxu0 0
    %1182 = vmatpush2.bf16.msra.mxu0 0
    %1183 = vmatprep.subr.bf16.mxu0 0
    %1184 = vmatpush2.bf16.msra.mxu0 0
    %1185 = vmatprep.subr.bf16.mxu0 0
    %1186 = vmatpush2.bf16.msra.mxu0 0
    %1187 = vmatprep.subr.bf16.mxu0 0
    %1188 = vmatpush2.bf16.msra.mxu0 0
    %1189 = vmatprep.subr.bf16.mxu0 0
    %1190 = vmatpush2.bf16.msra.mxu0 0
    %1191 = vmatprep.subr.bf16.mxu0 0
    %1192 = vmatpush2.bf16.msra.mxu0 0
    %1193 = vmatprep.mubr.bf16.mxu0 0
    %1194 = vmatmul.mubr.bf16.gmra.mxu0 %v973
    %v1195 = vpop.f32.mrf.mxu0
    %v1196 = vadd.f32 %v1116, %v1195
    %v1197 = vpop.f32.mrf.mxu0
    %v1198 = vpop.f32.mrf.mxu0
    %v1199 = vpop.f32.mrf.mxu0
    %1200 = vdwg.mxu0
    %v1202 = vrot.slane %v1155, 6
    %v1204 = vadd.f32 %v317, %v1202
    %v1205 = vxor.u32 %v1204, 2147483648
    %v1206 = vmul.f32 %v1205, 1.442695
    %v1207 = vpow.pop %v1206
    %v1208 = vadd.f32 %v1207, 1.0
    %v1209 = vrcp.pop %v1208
    %v1210 = vmul.f32 1.0, %v1209
    %v1212 = vrot.slane %v1157, 6
    %v1214 = vadd.f32 %v319, %v1212
    %v1215 = vxor.u32 %v1214, 2147483648
    %v1216 = vmul.f32 %v1215, 1.442695
    %v1217 = vpow.pop %v1216
    %v1218 = vadd.f32 %v1217, 1.0
    %v1219 = vrcp.pop %v1218
    %v1220 = vmul.f32 1.0, %v1219
    %v1222 = vrot.slane %v1196, 6
    %v1224 = vmul.f32 %v1210, %v1222
    %v1225 = vadd.f32 %v358, %v1224
    %v1226 = vtanh.pop %v1225
    %v1227 = vsub.f32 1.0, %v1220
    %v1228 = vmul.f32 %v1227, %v1226
    %v1230 = vrot.slane %v936, 7
    %v1232 = vmul.f32 %v1220, %v1230
    %v1233 = vadd.f32 %v1228, %v1232
    %1234 = vst [vmem:[#allocation11] sm:$0x4] %v1233
    %v1235 = vpack.c.bf16 %v1233, %v1233
    %v1236 = vld [vmem:[#allocation10] sm:$0xff]
    %v1237 = vld [vmem:[#allocation10 + $0x8] sm:$0xf]
    %v1238 = vld [vmem:[#allocation10 + $0xc] sm:$0xff]
    %v1239 = vld [vmem:[#allocation10 + $0x14] sm:$0xf]
    %v1240 = vld [vmem:[#allocation10 + $0x18] sm:$0xff]
    %v1241 = vld [vmem:[#allocation10 + $0x20] sm:$0xf]
    %v1242 = vld [vmem:[#allocation10 + $0x24] sm:$0xff]
    %v1243 = vld [vmem:[#allocation10 + $0x2c] sm:$0xf]
    %v1244 = vld [vmem:[#allocation10 + $0x30] sm:$0xff]
    %v1245 = vld [vmem:[#allocation10 + $0x38] sm:$0xf]
    %v1246 = vld [vmem:[#allocation10 + $0x3c] sm:$0xff]
    %v1247 = vld [vmem:[#allocation10 + $0x44] sm:$0xf]
    %v1248 = vld [vmem:[#allocation10 + $0x48] sm:$0xff]
    %v1249 = vld [vmem:[#allocation10 + $0x50] sm:$0xf]
    %v1250 = vld [vmem:[#allocation10 + $0x54] sm:$0xff]
    %v1251 = vld [vmem:[#allocation10 + $0x5c] sm:$0xf]
    %v1252 = vld [vmem:[#allocation10 + $0x60] sm:$0xff]
    %v1253 = vld [vmem:[#allocation10 + $0x68] sm:$0xf]
    %v1254 = vld [vmem:[#allocation10 + $0x6c] sm:$0xff]
    %v1255 = vld [vmem:[#allocation10 + $0x74] sm:$0xf]
    %v1256 = vld [vmem:[#allocation10 + $0x78] sm:$0xff]
    %v1257 = vld [vmem:[#allocation10 + $0x80] sm:$0xf]
    %v1258 = vld [vmem:[#allocation10 + $0x84] sm:$0xff]
    %v1259 = vld [vmem:[#allocation10 + $0x8c] sm:$0xf]
    %v1260 = vld [vmem:[#allocation10 + $0x90] sm:$0xff]
    %v1261 = vld [vmem:[#allocation10 + $0x98] sm:$0xf]
    %v1262 = vld [vmem:[#allocation10 + $0x9c] sm:$0xff]
    %v1263 = vld [vmem:[#allocation10 + $0xa4] sm:$0xf]
    %v1264 = vld [vmem:[#allocation10 + $0xa8] sm:$0xff]
    %v1265 = vld [vmem:[#allocation10 + $0xb0] sm:$0xf]
    %v1266 = vld [vmem:[#allocation10 + $0xb4] sm:$0xff]
    %v1267 = vld [vmem:[#allocation10 + $0xbc] sm:$0xf]
    %v1268 = vld [vmem:[%s6] sm:$0x7]
    %v1270 = vrot.slane %v1235, 1
    %v1304 = vunpack.c.l.b16 %v1236
    %v1305 = vunpack.c.h.b16 %v1236
    %v1306 = vunpack.c.l.b16 %v1237
    %v1307 = vunpack.c.l.b16 %v1238
    %v1308 = vunpack.c.h.b16 %v1238
    %v1309 = vunpack.c.l.b16 %v1239
    %v1310 = vunpack.c.l.b16 %v1240
    %v1311 = vunpack.c.h.b16 %v1240
    %v1312 = vunpack.c.l.b16 %v1241
    %v1313 = vunpack.c.l.b16 %v1242
    %v1314 = vunpack.c.h.b16 %v1242
    %v1315 = vunpack.c.l.b16 %v1243
    %v1316 = vunpack.c.l.b16 %v1244
    %v1317 = vunpack.c.h.b16 %v1244
    %v1318 = vunpack.c.l.b16 %v1245
    %v1319 = vunpack.c.l.b16 %v1246
    %v1320 = vunpack.c.h.b16 %v1246
    %v1321 = vunpack.c.l.b16 %v1247
    %v1322 = vunpack.c.l.b16 %v1248
    %v1323 = vunpack.c.h.b16 %v1248
    %v1324 = vunpack.c.l.b16 %v1249
    %v1325 = vunpack.c.l.b16 %v1250
    %v1326 = vunpack.c.h.b16 %v1250
    %v1327 = vunpack.c.l.b16 %v1251
    %v1328 = vunpack.c.l.b16 %v1252
    %v1329 = vunpack.c.h.b16 %v1252
    %v1330 = vunpack.c.l.b16 %v1253
    %v1331 = vunpack.c.l.b16 %v1254
    %v1332 = vunpack.c.h.b16 %v1254
    %v1333 = vunpack.c.l.b16 %v1255
    %v1334 = vunpack.c.l.b16 %v1256
    %v1335 = vunpack.c.h.b16 %v1256
    %v1336 = vunpack.c.l.b16 %v1257
    %v1337 = vunpack.c.l.b16 %v1258
    %v1338 = vunpack.c.h.b16 %v1258
    %v1339 = vunpack.c.l.b16 %v1259
    %v1340 = vunpack.c.l.b16 %v1260
    %v1341 = vunpack.c.h.b16 %v1260
    %v1342 = vunpack.c.l.b16 %v1261
    %v1343 = vunpack.c.l.b16 %v1262
    %v1344 = vunpack.c.h.b16 %v1262
    %v1345 = vunpack.c.l.b16 %v1263
    %v1346 = vunpack.c.l.b16 %v1264
    %v1347 = vunpack.c.h.b16 %v1264
    %v1348 = vunpack.c.l.b16 %v1265
    %v1349 = vunpack.c.l.b16 %v1266
    %v1350 = vunpack.c.h.b16 %v1266
    %v1351 = vunpack.c.l.b16 %v1267
    %v1352 = vpack.c.b16 %v1307, %v1304
    %v1353 = vpack.c.b16 %v1308, %v1305
    %v1354 = vpack.c.b16 %v1309, %v1306
    %v1355 = vpack.c.b16 %v1313, %v1310
    %v1356 = vpack.c.b16 %v1314, %v1311
    %v1357 = vpack.c.b16 %v1315, %v1312
    %v1358 = vpack.c.b16 %v1319, %v1316
    %v1359 = vpack.c.b16 %v1320, %v1317
    %v1360 = vpack.c.b16 %v1321, %v1318
    %v1361 = vpack.c.b16 %v1325, %v1322
    %v1362 = vpack.c.b16 %v1326, %v1323
    %v1363 = vpack.c.b16 %v1327, %v1324
    %v1364 = vpack.c.b16 %v1331, %v1328
    %v1365 = vpack.c.b16 %v1332, %v1329
    %v1366 = vpack.c.b16 %v1333, %v1330
    %v1367 = vpack.c.b16 %v1337, %v1334
    %v1368 = vpack.c.b16 %v1338, %v1335
    %v1369 = vpack.c.b16 %v1339, %v1336
    %v1370 = vpack.c.b16 %v1343, %v1340
    %v1371 = vpack.c.b16 %v1344, %v1341
    %v1372 = vpack.c.b16 %v1345, %v1342
    %v1373 = vpack.c.b16 %v1349, %v1346
    %v1374 = vpack.c.b16 %v1350, %v1347
    %v1375 = vpack.c.b16 %v1351, %v1348
    %v1401 = vlaneseq
    %v1402 = vshrl.u32 %v1401, 7
    %v1403 = vsub.s32 0, %v1402
    %v1404 = vrot.slane %v1268, %v1403
    %v1405 = vlaneseq
    %v1406 = vshrl.u32 %v1405, 7
    %v1407 = vsub.s32 1, %v1406
    %v1408 = vrot.slane %v1268, %v1407
    %v1409 = vlaneseq
    %v1410 = vshrl.u32 %v1409, 7
    %v1411 = vsub.s32 2, %v1410
    %v1412 = vrot.slane %v1268, %v1411
    %1416 = vmatprep.subr.bf16.mxu0 %v1374
    %1417 = vmatpush1.bf16.msra.mxu0 %v1373
    %1418 = vmatprep.subr.bf16.mxu0 %v1371
    %1419 = vmatpush1.bf16.msra.mxu0 %v1370
    %1420 = vmatprep.subr.bf16.mxu0 %v1368
    %1421 = vmatpush1.bf16.msra.mxu0 %v1367
    %1422 = vmatprep.subr.bf16.mxu0 %v1365
    %1423 = vmatpush1.bf16.msra.mxu0 %v1364
    %1424 = vmatprep.subr.bf16.mxu0 %v1362
    %1425 = vmatpush1.bf16.msra.mxu0 %v1361
    %1426 = vmatprep.subr.bf16.mxu0 %v1359
    %1427 = vmatpush1.bf16.msra.mxu0 %v1358
    %1428 = vmatprep.subr.bf16.mxu0 %v1356
    %1429 = vmatpush1.bf16.msra.mxu0 %v1355
    %1430 = vmatprep.subr.bf16.mxu0 %v1353
    %1431 = vmatpush1.bf16.msra.mxu0 %v1352
    %1432 = vmatprep.subr.bf16.mxu0 0
    %1433 = vmatpush2.bf16.msra.mxu0 0
    %1434 = vmatprep.subr.bf16.mxu0 0
    %1435 = vmatpush2.bf16.msra.mxu0 0
    %1436 = vmatprep.subr.bf16.mxu0 0
    %1437 = vmatpush2.bf16.msra.mxu0 0
    %1438 = vmatprep.subr.bf16.mxu0 0
    %1439 = vmatpush2.bf16.msra.mxu0 0
    %1440 = vmatprep.subr.bf16.mxu0 0
    %1441 = vmatpush2.bf16.msra.mxu0 0
    %1442 = vmatprep.subr.bf16.mxu0 0
    %1443 = vmatpush2.bf16.msra.mxu0 0
    %1444 = vmatprep.subr.bf16.mxu0 0
    %1445 = vmatpush2.bf16.msra.mxu0 0
    %1446 = vmatprep.subr.bf16.mxu0 0
    %1447 = vmatpush2.bf16.msra.mxu0 0
    %1448 = vmatprep.mubr.bf16.mxu0 0
    %1449 = vmatmul.mubr.bf16.gmra.mxu0 %v1270
    %v1450 = vpop.f32.mrf.mxu0
    %v1451 = vadd.f32 %v1404, %v1450
    %v1452 = vpop.f32.mrf.mxu0
    %v1453 = vadd.f32 %v1408, %v1452
    %v1454 = vpop.f32.mrf.mxu0
    %v1455 = vpop.f32.mrf.mxu0
    %1456 = vdwg.mxu0
    %1457 = vmatprep.subr.bf16.mxu0 0
    %1458 = vmatpush1.bf16.msra.mxu0 %v1375
    %1459 = vmatprep.subr.bf16.mxu0 0
    %1460 = vmatpush1.bf16.msra.mxu0 %v1372
    %1461 = vmatprep.subr.bf16.mxu0 0
    %1462 = vmatpush1.bf16.msra.mxu0 %v1369
    %1463 = vmatprep.subr.bf16.mxu0 0
    %1464 = vmatpush1.bf16.msra.mxu0 %v1366
    %1465 = vmatprep.subr.bf16.mxu0 0
    %1466 = vmatpush1.bf16.msra.mxu0 %v1363
    %1467 = vmatprep.subr.bf16.mxu0 0
    %1468 = vmatpush1.bf16.msra.mxu0 %v1360
    %1469 = vmatprep.subr.bf16.mxu0 0
    %1470 = vmatpush1.bf16.msra.mxu0 %v1357
    %1471 = vmatprep.subr.bf16.mxu0 0
    %1472 = vmatpush1.bf16.msra.mxu0 %v1354
    %1473 = vmatprep.subr.bf16.mxu0 0
    %1474 = vmatpush2.bf16.msra.mxu0 0
    %1475 = vmatprep.subr.bf16.mxu0 0
    %1476 = vmatpush2.bf16.msra.mxu0 0
    %1477 = vmatprep.subr.bf16.mxu0 0
    %1478 = vmatpush2.bf16.msra.mxu0 0
    %1479 = vmatprep.subr.bf16.mxu0 0
    %1480 = vmatpush2.bf16.msra.mxu0 0
    %1481 = vmatprep.subr.bf16.mxu0 0
    %1482 = vmatpush2.bf16.msra.mxu0 0
    %1483 = vmatprep.subr.bf16.mxu0 0
    %1484 = vmatpush2.bf16.msra.mxu0 0
    %1485 = vmatprep.subr.bf16.mxu0 0
    %1486 = vmatpush2.bf16.msra.mxu0 0
    %1487 = vmatprep.subr.bf16.mxu0 0
    %1488 = vmatpush2.bf16.msra.mxu0 0
    %1489 = vmatprep.mubr.bf16.mxu0 0
    %1490 = vmatmul.mubr.bf16.gmra.mxu0 %v1270
    %v1491 = vpop.f32.mrf.mxu0
    %v1492 = vadd.f32 %v1412, %v1491
    %v1493 = vpop.f32.mrf.mxu0
    %v1494 = vpop.f32.mrf.mxu0
    %v1495 = vpop.f32.mrf.mxu0
    %1496 = vdwg.mxu0
    %v1498 = vrot.slane %v1451, 5
    %v1500 = vadd.f32 %v317, %v1498
    %v1501 = vxor.u32 %v1500, 2147483648
    %v1502 = vmul.f32 %v1501, 1.442695
    %v1503 = vpow.pop %v1502
    %v1504 = vadd.f32 %v1503, 1.0
    %v1505 = vrcp.pop %v1504
    %v1506 = vmul.f32 1.0, %v1505
    %v1508 = vrot.slane %v1453, 5
    %v1510 = vadd.f32 %v319, %v1508
    %v1511 = vxor.u32 %v1510, 2147483648
    %v1512 = vmul.f32 %v1511, 1.442695
    %v1513 = vpow.pop %v1512
    %v1514 = vadd.f32 %v1513, 1.0
    %v1515 = vrcp.pop %v1514
    %v1516 = vmul.f32 1.0, %v1515
    %v1518 = vrot.slane %v1492, 5
    %v1520 = vmul.f32 %v1506, %v1518
    %v1521 = vadd.f32 %v358, %v1520
    %v1522 = vtanh.pop %v1521
    %v1523 = vsub.f32 1.0, %v1516
    %v1524 = vmul.f32 %v1523, %v1522
    %v1526 = vrot.slane %v1233, 7
    %v1528 = vmul.f32 %v1516, %v1526
    %v1529 = vadd.f32 %v1524, %v1528
    %1530 = vst [vmem:[#allocation11] sm:$0x8] %v1529
    %v1531 = vpack.c.bf16 %v1529, %v1529
    %v1532 = vld [vmem:[#allocation10] sm:$0xff]
    %v1533 = vld [vmem:[#allocation10 + $0x8] sm:$0xf]
    %v1534 = vld [vmem:[#allocation10 + $0xc] sm:$0xff]
    %v1535 = vld [vmem:[#allocation10 + $0x14] sm:$0xf]
    %v1536 = vld [vmem:[#allocation10 + $0x18] sm:$0xff]
    %v1537 = vld [vmem:[#allocation10 + $0x20] sm:$0xf]
    %v1538 = vld [vmem:[#allocation10 + $0x24] sm:$0xff]
    %v1539 = vld [vmem:[#allocation10 + $0x2c] sm:$0xf]
    %v1540 = vld [vmem:[#allocation10 + $0x30] sm:$0xff]
    %v1541 = vld [vmem:[#allocation10 + $0x38] sm:$0xf]
    %v1542 = vld [vmem:[#allocation10 + $0x3c] sm:$0xff]
    %v1543 = vld [vmem:[#allocation10 + $0x44] sm:$0xf]
    %v1544 = vld [vmem:[#allocation10 + $0x48] sm:$0xff]
    %v1545 = vld [vmem:[#allocation10 + $0x50] sm:$0xf]
    %v1546 = vld [vmem:[#allocation10 + $0x54] sm:$0xff]
    %v1547 = vld [vmem:[#allocation10 + $0x5c] sm:$0xf]
    %v1548 = vld [vmem:[#allocation10 + $0x60] sm:$0xff]
    %v1549 = vld [vmem:[#allocation10 + $0x68] sm:$0xf]
    %v1550 = vld [vmem:[#allocation10 + $0x6c] sm:$0xff]
    %v1551 = vld [vmem:[#allocation10 + $0x74] sm:$0xf]
    %v1552 = vld [vmem:[#allocation10 + $0x78] sm:$0xff]
    %v1553 = vld [vmem:[#allocation10 + $0x80] sm:$0xf]
    %v1554 = vld [vmem:[#allocation10 + $0x84] sm:$0xff]
    %v1555 = vld [vmem:[#allocation10 + $0x8c] sm:$0xf]
    %v1556 = vld [vmem:[#allocation10 + $0x90] sm:$0xff]
    %v1557 = vld [vmem:[#allocation10 + $0x98] sm:$0xf]
    %v1558 = vld [vmem:[#allocation10 + $0x9c] sm:$0xff]
    %v1559 = vld [vmem:[#allocation10 + $0xa4] sm:$0xf]
    %v1560 = vld [vmem:[#allocation10 + $0xa8] sm:$0xff]
    %v1561 = vld [vmem:[#allocation10 + $0xb0] sm:$0xf]
    %v1562 = vld [vmem:[#allocation10 + $0xb4] sm:$0xff]
    %v1563 = vld [vmem:[#allocation10 + $0xbc] sm:$0xf]
    %v1564 = vld [vmem:[%s6] sm:$0x7]
    %v1566 = vshrl.u32 %v1531, 16
    %v1568 = vrot.slane %v1566, 1
    %v1602 = vunpack.c.l.b16 %v1532
    %v1603 = vunpack.c.h.b16 %v1532
    %v1604 = vunpack.c.l.b16 %v1533
    %v1605 = vunpack.c.l.b16 %v1534
    %v1606 = vunpack.c.h.b16 %v1534
    %v1607 = vunpack.c.l.b16 %v1535
    %v1608 = vunpack.c.l.b16 %v1536
    %v1609 = vunpack.c.h.b16 %v1536
    %v1610 = vunpack.c.l.b16 %v1537
    %v1611 = vunpack.c.l.b16 %v1538
    %v1612 = vunpack.c.h.b16 %v1538
    %v1613 = vunpack.c.l.b16 %v1539
    %v1614 = vunpack.c.l.b16 %v1540
    %v1615 = vunpack.c.h.b16 %v1540
    %v1616 = vunpack.c.l.b16 %v1541
    %v1617 = vunpack.c.l.b16 %v1542
    %v1618 = vunpack.c.h.b16 %v1542
    %v1619 = vunpack.c.l.b16 %v1543
    %v1620 = vunpack.c.l.b16 %v1544
    %v1621 = vunpack.c.h.b16 %v1544
    %v1622 = vunpack.c.l.b16 %v1545
    %v1623 = vunpack.c.l.b16 %v1546
    %v1624 = vunpack.c.h.b16 %v1546
    %v1625 = vunpack.c.l.b16 %v1547
    %v1626 = vunpack.c.l.b16 %v1548
    %v1627 = vunpack.c.h.b16 %v1548
    %v1628 = vunpack.c.l.b16 %v1549
    %v1629 = vunpack.c.l.b16 %v1550
    %v1630 = vunpack.c.h.b16 %v1550
    %v1631 = vunpack.c.l.b16 %v1551
    %v1632 = vunpack.c.l.b16 %v1552
    %v1633 = vunpack.c.h.b16 %v1552
    %v1634 = vunpack.c.l.b16 %v1553
    %v1635 = vunpack.c.l.b16 %v1554
    %v1636 = vunpack.c.h.b16 %v1554
    %v1637 = vunpack.c.l.b16 %v1555
    %v1638 = vunpack.c.l.b16 %v1556
    %v1639 = vunpack.c.h.b16 %v1556
    %v1640 = vunpack.c.l.b16 %v1557
    %v1641 = vunpack.c.l.b16 %v1558
    %v1642 = vunpack.c.h.b16 %v1558
    %v1643 = vunpack.c.l.b16 %v1559
    %v1644 = vunpack.c.l.b16 %v1560
    %v1645 = vunpack.c.h.b16 %v1560
    %v1646 = vunpack.c.l.b16 %v1561
    %v1647 = vunpack.c.l.b16 %v1562
    %v1648 = vunpack.c.h.b16 %v1562
    %v1649 = vunpack.c.l.b16 %v1563
    %v1650 = vpack.c.b16 %v1605, %v1602
    %v1651 = vpack.c.b16 %v1606, %v1603
    %v1652 = vpack.c.b16 %v1607, %v1604
    %v1653 = vpack.c.b16 %v1611, %v1608
    %v1654 = vpack.c.b16 %v1612, %v1609
    %v1655 = vpack.c.b16 %v1613, %v1610
    %v1656 = vpack.c.b16 %v1617, %v1614
    %v1657 = vpack.c.b16 %v1618, %v1615
    %v1658 = vpack.c.b16 %v1619, %v1616
    %v1659 = vpack.c.b16 %v1623, %v1620
    %v1660 = vpack.c.b16 %v1624, %v1621
    %v1661 = vpack.c.b16 %v1625, %v1622
    %v1662 = vpack.c.b16 %v1629, %v1626
    %v1663 = vpack.c.b16 %v1630, %v1627
    %v1664 = vpack.c.b16 %v1631, %v1628
    %v1665 = vpack.c.b16 %v1635, %v1632
    %v1666 = vpack.c.b16 %v1636, %v1633
    %v1667 = vpack.c.b16 %v1637, %v1634
    %v1668 = vpack.c.b16 %v1641, %v1638
    %v1669 = vpack.c.b16 %v1642, %v1639
    %v1670 = vpack.c.b16 %v1643, %v1640
    %v1671 = vpack.c.b16 %v1647, %v1644
    %v1672 = vpack.c.b16 %v1648, %v1645
    %v1673 = vpack.c.b16 %v1649, %v1646
    %v1699 = vlaneseq
    %v1700 = vshrl.u32 %v1699, 7
    %v1701 = vsub.s32 0, %v1700
    %v1702 = vrot.slane %v1564, %v1701
    %v1703 = vlaneseq
    %v1704 = vshrl.u32 %v1703, 7
    %v1705 = vsub.s32 1, %v1704
    %v1706 = vrot.slane %v1564, %v1705
    %v1707 = vlaneseq
    %v1708 = vshrl.u32 %v1707, 7
    %v1709 = vsub.s32 2, %v1708
    %v1710 = vrot.slane %v1564, %v1709
    %1714 = vmatprep.subr.bf16.mxu0 %v1672
    %1715 = vmatpush1.bf16.msra.mxu0 %v1671
    %1716 = vmatprep.subr.bf16.mxu0 %v1669
    %1717 = vmatpush1.bf16.msra.mxu0 %v1668
    %1718 = vmatprep.subr.bf16.mxu0 %v1666
    %1719 = vmatpush1.bf16.msra.mxu0 %v1665
    %1720 = vmatprep.subr.bf16.mxu0 %v1663
    %1721 = vmatpush1.bf16.msra.mxu0 %v1662
    %1722 = vmatprep.subr.bf16.mxu0 %v1660
    %1723 = vmatpush1.bf16.msra.mxu0 %v1659
    %1724 = vmatprep.subr.bf16.mxu0 %v1657
    %1725 = vmatpush1.bf16.msra.mxu0 %v1656
    %1726 = vmatprep.subr.bf16.mxu0 %v1654
    %1727 = vmatpush1.bf16.msra.mxu0 %v1653
    %1728 = vmatprep.subr.bf16.mxu0 %v1651
    %1729 = vmatpush1.bf16.msra.mxu0 %v1650
    %1730 = vmatprep.subr.bf16.mxu0 0
    %1731 = vmatpush2.bf16.msra.mxu0 0
    %1732 = vmatprep.subr.bf16.mxu0 0
    %1733 = vmatpush2.bf16.msra.mxu0 0
    %1734 = vmatprep.subr.bf16.mxu0 0
    %1735 = vmatpush2.bf16.msra.mxu0 0
    %1736 = vmatprep.subr.bf16.mxu0 0
    %1737 = vmatpush2.bf16.msra.mxu0 0
    %1738 = vmatprep.subr.bf16.mxu0 0
    %1739 = vmatpush2.bf16.msra.mxu0 0
    %1740 = vmatprep.subr.bf16.mxu0 0
    %1741 = vmatpush2.bf16.msra.mxu0 0
    %1742 = vmatprep.subr.bf16.mxu0 0
    %1743 = vmatpush2.bf16.msra.mxu0 0
    %1744 = vmatprep.subr.bf16.mxu0 0
    %1745 = vmatpush2.bf16.msra.mxu0 0
    %1746 = vmatprep.mubr.bf16.mxu0 0
    %1747 = vmatmul.mubr.bf16.gmra.mxu0 %v1568
    %v1748 = vpop.f32.mrf.mxu0
    %v1749 = vadd.f32 %v1702, %v1748
    %v1750 = vpop.f32.mrf.mxu0
    %v1751 = vadd.f32 %v1706, %v1750
    %v1752 = vpop.f32.mrf.mxu0
    %v1753 = vpop.f32.mrf.mxu0
    %1754 = vdwg.mxu0
    %1755 = vmatprep.subr.bf16.mxu0 0
    %1756 = vmatpush1.bf16.msra.mxu0 %v1673
    %1757 = vmatprep.subr.bf16.mxu0 0
    %1758 = vmatpush1.bf16.msra.mxu0 %v1670
    %1759 = vmatprep.subr.bf16.mxu0 0
    %1760 = vmatpush1.bf16.msra.mxu0 %v1667
    %1761 = vmatprep.subr.bf16.mxu0 0
    %1762 = vmatpush1.bf16.msra.mxu0 %v1664
    %1763 = vmatprep.subr.bf16.mxu0 0
    %1764 = vmatpush1.bf16.msra.mxu0 %v1661
    %1765 = vmatprep.subr.bf16.mxu0 0
    %1766 = vmatpush1.bf16.msra.mxu0 %v1658
    %1767 = vmatprep.subr.bf16.mxu0 0
    %1768 = vmatpush1.bf16.msra.mxu0 %v1655
    %1769 = vmatprep.subr.bf16.mxu0 0
    %1770 = vmatpush1.bf16.msra.mxu0 %v1652
    %1771 = vmatprep.subr.bf16.mxu0 0
    %1772 = vmatpush2.bf16.msra.mxu0 0
    %1773 = vmatprep.subr.bf16.mxu0 0
    %1774 = vmatpush2.bf16.msra.mxu0 0
    %1775 = vmatprep.subr.bf16.mxu0 0
    %1776 = vmatpush2.bf16.msra.mxu0 0
    %1777 = vmatprep.subr.bf16.mxu0 0
    %1778 = vmatpush2.bf16.msra.mxu0 0
    %1779 = vmatprep.subr.bf16.mxu0 0
    %1780 = vmatpush2.bf16.msra.mxu0 0
    %1781 = vmatprep.subr.bf16.mxu0 0
    %1782 = vmatpush2.bf16.msra.mxu0 0
    %1783 = vmatprep.subr.bf16.mxu0 0
    %1784 = vmatpush2.bf16.msra.mxu0 0
    %1785 = vmatprep.subr.bf16.mxu0 0
    %1786 = vmatpush2.bf16.msra.mxu0 0
    %1787 = vmatprep.mubr.bf16.mxu0 0
    %1788 = vmatmul.mubr.bf16.gmra.mxu0 %v1568
    %v1789 = vpop.f32.mrf.mxu0
    %v1790 = vadd.f32 %v1710, %v1789
    %v1791 = vpop.f32.mrf.mxu0
    %v1792 = vpop.f32.mrf.mxu0
    %v1793 = vpop.f32.mrf.mxu0
    %1794 = vdwg.mxu0
    %v1796 = vrot.slane %v1749, 4
    %v1798 = vadd.f32 %v317, %v1796
    %v1799 = vxor.u32 %v1798, 2147483648
    %v1800 = vmul.f32 %v1799, 1.442695
    %v1801 = vpow.pop %v1800
    %v1802 = vadd.f32 %v1801, 1.0
    %v1803 = vrcp.pop %v1802
    %v1804 = vmul.f32 1.0, %v1803
    %v1806 = vrot.slane %v1751, 4
    %v1808 = vadd.f32 %v319, %v1806
    %v1809 = vxor.u32 %v1808, 2147483648
    %v1810 = vmul.f32 %v1809, 1.442695
    %v1811 = vpow.pop %v1810
    %v1812 = vadd.f32 %v1811, 1.0
    %v1813 = vrcp.pop %v1812
    %v1814 = vmul.f32 1.0, %v1813
    %v1816 = vrot.slane %v1790, 4
    %v1818 = vmul.f32 %v1804, %v1816
    %v1819 = vadd.f32 %v358, %v1818
    %v1820 = vtanh.pop %v1819
    %v1821 = vsub.f32 1.0, %v1814
    %v1822 = vmul.f32 %v1821, %v1820
    %v1824 = vrot.slane %v1529, 7
    %v1826 = vmul.f32 %v1814, %v1824
    %v1827 = vadd.f32 %v1822, %v1826
    %1828 = vst [vmem:[#allocation11] sm:$0x10] %v1827
    %v1829 = vpack.c.bf16 %v1827, %v1827
    %v1830 = vld [vmem:[#allocation10] sm:$0xff]
    %v1831 = vld [vmem:[#allocation10 + $0x8] sm:$0xf]
    %v1832 = vld [vmem:[#allocation10 + $0xc] sm:$0xff]
    %v1833 = vld [vmem:[#allocation10 + $0x14] sm:$0xf]
    %v1834 = vld [vmem:[#allocation10 + $0x18] sm:$0xff]
    %v1835 = vld [vmem:[#allocation10 + $0x20] sm:$0xf]
    %v1836 = vld [vmem:[#allocation10 + $0x24] sm:$0xff]
    %v1837 = vld [vmem:[#allocation10 + $0x2c] sm:$0xf]
    %v1838 = vld [vmem:[#allocation10 + $0x30] sm:$0xff]
    %v1839 = vld [vmem:[#allocation10 + $0x38] sm:$0xf]
    %v1840 = vld [vmem:[#allocation10 + $0x3c] sm:$0xff]
    %v1841 = vld [vmem:[#allocation10 + $0x44] sm:$0xf]
    %v1842 = vld [vmem:[#allocation10 + $0x48] sm:$0xff]
    %v1843 = vld [vmem:[#allocation10 + $0x50] sm:$0xf]
    %v1844 = vld [vmem:[#allocation10 + $0x54] sm:$0xff]
    %v1845 = vld [vmem:[#allocation10 + $0x5c] sm:$0xf]
    %v1846 = vld [vmem:[#allocation10 + $0x60] sm:$0xff]
    %v1847 = vld [vmem:[#allocation10 + $0x68] sm:$0xf]
    %v1848 = vld [vmem:[#allocation10 + $0x6c] sm:$0xff]
    %v1849 = vld [vmem:[#allocation10 + $0x74] sm:$0xf]
    %v1850 = vld [vmem:[#allocation10 + $0x78] sm:$0xff]
    %v1851 = vld [vmem:[#allocation10 + $0x80] sm:$0xf]
    %v1852 = vld [vmem:[#allocation10 + $0x84] sm:$0xff]
    %v1853 = vld [vmem:[#allocation10 + $0x8c] sm:$0xf]
    %v1854 = vld [vmem:[#allocation10 + $0x90] sm:$0xff]
    %v1855 = vld [vmem:[#allocation10 + $0x98] sm:$0xf]
    %v1856 = vld [vmem:[#allocation10 + $0x9c] sm:$0xff]
    %v1857 = vld [vmem:[#allocation10 + $0xa4] sm:$0xf]
    %v1858 = vld [vmem:[#allocation10 + $0xa8] sm:$0xff]
    %v1859 = vld [vmem:[#allocation10 + $0xb0] sm:$0xf]
    %v1860 = vld [vmem:[#allocation10 + $0xb4] sm:$0xff]
    %v1861 = vld [vmem:[#allocation10 + $0xbc] sm:$0xf]
    %v1862 = vld [vmem:[%s6] sm:$0x7]
    %v1864 = vrot.slane %v1829, 2
    %v1898 = vunpack.c.l.b16 %v1830
    %v1899 = vunpack.c.h.b16 %v1830
    %v1900 = vunpack.c.l.b16 %v1831
    %v1901 = vunpack.c.l.b16 %v1832
    %v1902 = vunpack.c.h.b16 %v1832
    %v1903 = vunpack.c.l.b16 %v1833
    %v1904 = vunpack.c.l.b16 %v1834
    %v1905 = vunpack.c.h.b16 %v1834
    %v1906 = vunpack.c.l.b16 %v1835
    %v1907 = vunpack.c.l.b16 %v1836
    %v1908 = vunpack.c.h.b16 %v1836
    %v1909 = vunpack.c.l.b16 %v1837
    %v1910 = vunpack.c.l.b16 %v1838
    %v1911 = vunpack.c.h.b16 %v1838
    %v1912 = vunpack.c.l.b16 %v1839
    %v1913 = vunpack.c.l.b16 %v1840
    %v1914 = vunpack.c.h.b16 %v1840
    %v1915 = vunpack.c.l.b16 %v1841
    %v1916 = vunpack.c.l.b16 %v1842
    %v1917 = vunpack.c.h.b16 %v1842
    %v1918 = vunpack.c.l.b16 %v1843
    %v1919 = vunpack.c.l.b16 %v1844
    %v1920 = vunpack.c.h.b16 %v1844
    %v1921 = vunpack.c.l.b16 %v1845
    %v1922 = vunpack.c.l.b16 %v1846
    %v1923 = vunpack.c.h.b16 %v1846
    %v1924 = vunpack.c.l.b16 %v1847
    %v1925 = vunpack.c.l.b16 %v1848
    %v1926 = vunpack.c.h.b16 %v1848
    %v1927 = vunpack.c.l.b16 %v1849
    %v1928 = vunpack.c.l.b16 %v1850
    %v1929 = vunpack.c.h.b16 %v1850
    %v1930 = vunpack.c.l.b16 %v1851
    %v1931 = vunpack.c.l.b16 %v1852
    %v1932 = vunpack.c.h.b16 %v1852
    %v1933 = vunpack.c.l.b16 %v1853
    %v1934 = vunpack.c.l.b16 %v1854
    %v1935 = vunpack.c.h.b16 %v1854
    %v1936 = vunpack.c.l.b16 %v1855
    %v1937 = vunpack.c.l.b16 %v1856
    %v1938 = vunpack.c.h.b16 %v1856
    %v1939 = vunpack.c.l.b16 %v1857
    %v1940 = vunpack.c.l.b16 %v1858
    %v1941 = vunpack.c.h.b16 %v1858
    %v1942 = vunpack.c.l.b16 %v1859
    %v1943 = vunpack.c.l.b16 %v1860
    %v1944 = vunpack.c.h.b16 %v1860
    %v1945 = vunpack.c.l.b16 %v1861
    %v1946 = vpack.c.b16 %v1901, %v1898
    %v1947 = vpack.c.b16 %v1902, %v1899
    %v1948 = vpack.c.b16 %v1903, %v1900
    %v1949 = vpack.c.b16 %v1907, %v1904
    %v1950 = vpack.c.b16 %v1908, %v1905
    %v1951 = vpack.c.b16 %v1909, %v1906
    %v1952 = vpack.c.b16 %v1913, %v1910
    %v1953 = vpack.c.b16 %v1914, %v1911
    %v1954 = vpack.c.b16 %v1915, %v1912
    %v1955 = vpack.c.b16 %v1919, %v1916
    %v1956 = vpack.c.b16 %v1920, %v1917
    %v1957 = vpack.c.b16 %v1921, %v1918
    %v1958 = vpack.c.b16 %v1925, %v1922
    %v1959 = vpack.c.b16 %v1926, %v1923
    %v1960 = vpack.c.b16 %v1927, %v1924
    %v1961 = vpack.c.b16 %v1931, %v1928
    %v1962 = vpack.c.b16 %v1932, %v1929
    %v1963 = vpack.c.b16 %v1933, %v1930
    %v1964 = vpack.c.b16 %v1937, %v1934
    %v1965 = vpack.c.b16 %v1938, %v1935
    %v1966 = vpack.c.b16 %v1939, %v1936
    %v1967 = vpack.c.b16 %v1943, %v1940
    %v1968 = vpack.c.b16 %v1944, %v1941
    %v1969 = vpack.c.b16 %v1945, %v1942
    %v1995 = vlaneseq
    %v1996 = vshrl.u32 %v1995, 7
    %v1997 = vsub.s32 0, %v1996
    %v1998 = vrot.slane %v1862, %v1997
    %v1999 = vlaneseq
    %v2000 = vshrl.u32 %v1999, 7
    %v2001 = vsub.s32 1, %v2000
    %v2002 = vrot.slane %v1862, %v2001
    %v2003 = vlaneseq
    %v2004 = vshrl.u32 %v2003, 7
    %v2005 = vsub.s32 2, %v2004
    %v2006 = vrot.slane %v1862, %v2005
    %2010 = vmatprep.subr.bf16.mxu0 %v1968
    %2011 = vmatpush1.bf16.msra.mxu0 %v1967
    %2012 = vmatprep.subr.bf16.mxu0 %v1965
    %2013 = vmatpush1.bf16.msra.mxu0 %v1964
    %2014 = vmatprep.subr.bf16.mxu0 %v1962
    %2015 = vmatpush1.bf16.msra.mxu0 %v1961
    %2016 = vmatprep.subr.bf16.mxu0 %v1959
    %2017 = vmatpush1.bf16.msra.mxu0 %v1958
    %2018 = vmatprep.subr.bf16.mxu0 %v1956
    %2019 = vmatpush1.bf16.msra.mxu0 %v1955
    %2020 = vmatprep.subr.bf16.mxu0 %v1953
    %2021 = vmatpush1.bf16.msra.mxu0 %v1952
    %2022 = vmatprep.subr.bf16.mxu0 %v1950
    %2023 = vmatpush1.bf16.msra.mxu0 %v1949
    %2024 = vmatprep.subr.bf16.mxu0 %v1947
    %2025 = vmatpush1.bf16.msra.mxu0 %v1946
    %2026 = vmatprep.subr.bf16.mxu0 0
    %2027 = vmatpush2.bf16.msra.mxu0 0
    %2028 = vmatprep.subr.bf16.mxu0 0
    %2029 = vmatpush2.bf16.msra.mxu0 0
    %2030 = vmatprep.subr.bf16.mxu0 0
    %2031 = vmatpush2.bf16.msra.mxu0 0
    %2032 = vmatprep.subr.bf16.mxu0 0
    %2033 = vmatpush2.bf16.msra.mxu0 0
    %2034 = vmatprep.subr.bf16.mxu0 0
    %2035 = vmatpush2.bf16.msra.mxu0 0
    %2036 = vmatprep.subr.bf16.mxu0 0
    %2037 = vmatpush2.bf16.msra.mxu0 0
    %2038 = vmatprep.subr.bf16.mxu0 0
    %2039 = vmatpush2.bf16.msra.mxu0 0
    %2040 = vmatprep.subr.bf16.mxu0 0
    %2041 = vmatpush2.bf16.msra.mxu0 0
    %2042 = vmatprep.mubr.bf16.mxu0 0
    %2043 = vmatmul.mubr.bf16.gmra.mxu0 %v1864
    %v2044 = vpop.f32.mrf.mxu0
    %v2045 = vadd.f32 %v1998, %v2044
    %v2046 = vpop.f32.mrf.mxu0
    %v2047 = vadd.f32 %v2002, %v2046
    %v2048 = vpop.f32.mrf.mxu0
    %v2049 = vpop.f32.mrf.mxu0
    %2050 = vdwg.mxu0
    %2051 = vmatprep.subr.bf16.mxu0 0
    %2052 = vmatpush1.bf16.msra.mxu0 %v1969
    %2053 = vmatprep.subr.bf16.mxu0 0
    %2054 = vmatpush1.bf16.msra.mxu0 %v1966
    %2055 = vmatprep.subr.bf16.mxu0 0
    %2056 = vmatpush1.bf16.msra.mxu0 %v1963
    %2057 = vmatprep.subr.bf16.mxu0 0
    %2058 = vmatpush1.bf16.msra.mxu0 %v1960
    %2059 = vmatprep.subr.bf16.mxu0 0
    %2060 = vmatpush1.bf16.msra.mxu0 %v1957
    %2061 = vmatprep.subr.bf16.mxu0 0
    %2062 = vmatpush1.bf16.msra.mxu0 %v1954
    %2063 = vmatprep.subr.bf16.mxu0 0
    %2064 = vmatpush1.bf16.msra.mxu0 %v1951
    %2065 = vmatprep.subr.bf16.mxu0 0
    %2066 = vmatpush1.bf16.msra.mxu0 %v1948
    %2067 = vmatprep.subr.bf16.mxu0 0
    %2068 = vmatpush2.bf16.msra.mxu0 0
    %2069 = vmatprep.subr.bf16.mxu0 0
    %2070 = vmatpush2.bf16.msra.mxu0 0
    %2071 = vmatprep.subr.bf16.mxu0 0
    %2072 = vmatpush2.bf16.msra.mxu0 0
    %2073 = vmatprep.subr.bf16.mxu0 0
    %2074 = vmatpush2.bf16.msra.mxu0 0
    %2075 = vmatprep.subr.bf16.mxu0 0
    %2076 = vmatpush2.bf16.msra.mxu0 0
    %2077 = vmatprep.subr.bf16.mxu0 0
    %2078 = vmatpush2.bf16.msra.mxu0 0
    %2079 = vmatprep.subr.bf16.mxu0 0
    %2080 = vmatpush2.bf16.msra.mxu0 0
    %2081 = vmatprep.subr.bf16.mxu0 0
    %2082 = vmatpush2.bf16.msra.mxu0 0
    %2083 = vmatprep.mubr.bf16.mxu0 0
    %2084 = vmatmul.mubr.bf16.gmra.mxu0 %v1864
    %v2085 = vpop.f32.mrf.mxu0
    %v2086 = vadd.f32 %v2006, %v2085
    %v2087 = vpop.f32.mrf.mxu0
    %v2088 = vpop.f32.mrf.mxu0
    %v2089 = vpop.f32.mrf.mxu0
    %2090 = vdwg.mxu0
    %v2092 = vrot.slane %v2045, 3
    %v2094 = vadd.f32 %v317, %v2092
    %v2095 = vxor.u32 %v2094, 2147483648
    %v2096 = vmul.f32 %v2095, 1.442695
    %v2097 = vpow.pop %v2096
    %v2098 = vadd.f32 %v2097, 1.0
    %v2099 = vrcp.pop %v2098
    %v2100 = vmul.f32 1.0, %v2099
    %v2102 = vrot.slane %v2047, 3
    %v2104 = vadd.f32 %v319, %v2102
    %v2105 = vxor.u32 %v2104, 2147483648
    %v2106 = vmul.f32 %v2105, 1.442695
    %v2107 = vpow.pop %v2106
    %v2108 = vadd.f32 %v2107, 1.0
    %v2109 = vrcp.pop %v2108
    %v2110 = vmul.f32 1.0, %v2109
    %v2112 = vrot.slane %v2086, 3
    %v2114 = vmul.f32 %v2100, %v2112
    %v2115 = vadd.f32 %v358, %v2114
    %v2116 = vtanh.pop %v2115
    %v2117 = vsub.f32 1.0, %v2110
    %v2118 = vmul.f32 %v2117, %v2116
    %v2120 = vrot.slane %v1827, 7
    %v2122 = vmul.f32 %v2110, %v2120
    %v2123 = vadd.f32 %v2118, %v2122
    %2124 = vst [vmem:[#allocation11] sm:$0x20] %v2123
    %v2125 = vpack.c.bf16 %v2123, %v2123
    %v2126 = vld [vmem:[#allocation10] sm:$0xff]
    %v2127 = vld [vmem:[#allocation10 + $0x8] sm:$0xf]
    %v2128 = vld [vmem:[#allocation10 + $0xc] sm:$0xff]
    %v2129 = vld [vmem:[#allocation10 + $0x14] sm:$0xf]
    %v2130 = vld [vmem:[#allocation10 + $0x18] sm:$0xff]
    %v2131 = vld [vmem:[#allocation10 + $0x20] sm:$0xf]
    %v2132 = vld [vmem:[#allocation10 + $0x24] sm:$0xff]
    %v2133 = vld [vmem:[#allocation10 + $0x2c] sm:$0xf]
    %v2134 = vld [vmem:[#allocation10 + $0x30] sm:$0xff]
    %v2135 = vld [vmem:[#allocation10 + $0x38] sm:$0xf]
    %v2136 = vld [vmem:[#allocation10 + $0x3c] sm:$0xff]
    %v2137 = vld [vmem:[#allocation10 + $0x44] sm:$0xf]
    %v2138 = vld [vmem:[#allocation10 + $0x48] sm:$0xff]
    %v2139 = vld [vmem:[#allocation10 + $0x50] sm:$0xf]
    %v2140 = vld [vmem:[#allocation10 + $0x54] sm:$0xff]
    %v2141 = vld [vmem:[#allocation10 + $0x5c] sm:$0xf]
    %v2142 = vld [vmem:[#allocation10 + $0x60] sm:$0xff]
    %v2143 = vld [vmem:[#allocation10 + $0x68] sm:$0xf]
    %v2144 = vld [vmem:[#allocation10 + $0x6c] sm:$0xff]
    %v2145 = vld [vmem:[#allocation10 + $0x74] sm:$0xf]
    %v2146 = vld [vmem:[#allocation10 + $0x78] sm:$0xff]
    %v2147 = vld [vmem:[#allocation10 + $0x80] sm:$0xf]
    %v2148 = vld [vmem:[#allocation10 + $0x84] sm:$0xff]
    %v2149 = vld [vmem:[#allocation10 + $0x8c] sm:$0xf]
    %v2150 = vld [vmem:[#allocation10 + $0x90] sm:$0xff]
    %v2151 = vld [vmem:[#allocation10 + $0x98] sm:$0xf]
    %v2152 = vld [vmem:[#allocation10 + $0x9c] sm:$0xff]
    %v2153 = vld [vmem:[#allocation10 + $0xa4] sm:$0xf]
    %v2154 = vld [vmem:[#allocation10 + $0xa8] sm:$0xff]
    %v2155 = vld [vmem:[#allocation10 + $0xb0] sm:$0xf]
    %v2156 = vld [vmem:[#allocation10 + $0xb4] sm:$0xff]
    %v2157 = vld [vmem:[#allocation10 + $0xbc] sm:$0xf]
    %v2158 = vld [vmem:[%s6] sm:$0x7]
    %v2160 = vshrl.u32 %v2125, 16
    %v2162 = vrot.slane %v2160, 2
    %v2196 = vunpack.c.l.b16 %v2126
    %v2197 = vunpack.c.h.b16 %v2126
    %v2198 = vunpack.c.l.b16 %v2127
    %v2199 = vunpack.c.l.b16 %v2128
    %v2200 = vunpack.c.h.b16 %v2128
    %v2201 = vunpack.c.l.b16 %v2129
    %v2202 = vunpack.c.l.b16 %v2130
    %v2203 = vunpack.c.h.b16 %v2130
    %v2204 = vunpack.c.l.b16 %v2131
    %v2205 = vunpack.c.l.b16 %v2132
    %v2206 = vunpack.c.h.b16 %v2132
    %v2207 = vunpack.c.l.b16 %v2133
    %v2208 = vunpack.c.l.b16 %v2134
    %v2209 = vunpack.c.h.b16 %v2134
    %v2210 = vunpack.c.l.b16 %v2135
    %v2211 = vunpack.c.l.b16 %v2136
    %v2212 = vunpack.c.h.b16 %v2136
    %v2213 = vunpack.c.l.b16 %v2137
    %v2214 = vunpack.c.l.b16 %v2138
    %v2215 = vunpack.c.h.b16 %v2138
    %v2216 = vunpack.c.l.b16 %v2139
    %v2217 = vunpack.c.l.b16 %v2140
    %v2218 = vunpack.c.h.b16 %v2140
    %v2219 = vunpack.c.l.b16 %v2141
    %v2220 = vunpack.c.l.b16 %v2142
    %v2221 = vunpack.c.h.b16 %v2142
    %v2222 = vunpack.c.l.b16 %v2143
    %v2223 = vunpack.c.l.b16 %v2144
    %v2224 = vunpack.c.h.b16 %v2144
    %v2225 = vunpack.c.l.b16 %v2145
    %v2226 = vunpack.c.l.b16 %v2146
    %v2227 = vunpack.c.h.b16 %v2146
    %v2228 = vunpack.c.l.b16 %v2147
    %v2229 = vunpack.c.l.b16 %v2148
    %v2230 = vunpack.c.h.b16 %v2148
    %v2231 = vunpack.c.l.b16 %v2149
    %v2232 = vunpack.c.l.b16 %v2150
    %v2233 = vunpack.c.h.b16 %v2150
    %v2234 = vunpack.c.l.b16 %v2151
    %v2235 = vunpack.c.l.b16 %v2152
    %v2236 = vunpack.c.h.b16 %v2152
    %v2237 = vunpack.c.l.b16 %v2153
    %v2238 = vunpack.c.l.b16 %v2154
    %v2239 = vunpack.c.h.b16 %v2154
    %v2240 = vunpack.c.l.b16 %v2155
    %v2241 = vunpack.c.l.b16 %v2156
    %v2242 = vunpack.c.h.b16 %v2156
    %v2243 = vunpack.c.l.b16 %v2157
    %v2244 = vpack.c.b16 %v2199, %v2196
    %v2245 = vpack.c.b16 %v2200, %v2197
    %v2246 = vpack.c.b16 %v2201, %v2198
    %v2247 = vpack.c.b16 %v2205, %v2202
    %v2248 = vpack.c.b16 %v2206, %v2203
    %v2249 = vpack.c.b16 %v2207, %v2204
    %v2250 = vpack.c.b16 %v2211, %v2208
    %v2251 = vpack.c.b16 %v2212, %v2209
    %v2252 = vpack.c.b16 %v2213, %v2210
    %v2253 = vpack.c.b16 %v2217, %v2214
    %v2254 = vpack.c.b16 %v2218, %v2215
    %v2255 = vpack.c.b16 %v2219, %v2216
    %v2256 = vpack.c.b16 %v2223, %v2220
    %v2257 = vpack.c.b16 %v2224, %v2221
    %v2258 = vpack.c.b16 %v2225, %v2222
    %v2259 = vpack.c.b16 %v2229, %v2226
    %v2260 = vpack.c.b16 %v2230, %v2227
    %v2261 = vpack.c.b16 %v2231, %v2228
    %v2262 = vpack.c.b16 %v2235, %v2232
    %v2263 = vpack.c.b16 %v2236, %v2233
    %v2264 = vpack.c.b16 %v2237, %v2234
    %v2265 = vpack.c.b16 %v2241, %v2238
    %v2266 = vpack.c.b16 %v2242, %v2239
    %v2267 = vpack.c.b16 %v2243, %v2240
    %v2293 = vlaneseq
    %v2294 = vshrl.u32 %v2293, 7
    %v2295 = vsub.s32 0, %v2294
    %v2296 = vrot.slane %v2158, %v2295
    %v2297 = vlaneseq
    %v2298 = vshrl.u32 %v2297, 7
    %v2299 = vsub.s32 1, %v2298
    %v2300 = vrot.slane %v2158, %v2299
    %v2301 = vlaneseq
    %v2302 = vshrl.u32 %v2301, 7
    %v2303 = vsub.s32 2, %v2302
    %v2304 = vrot.slane %v2158, %v2303
    %2308 = vmatprep.subr.bf16.mxu0 %v2266
    %2309 = vmatpush1.bf16.msra.mxu0 %v2265
    %2310 = vmatprep.subr.bf16.mxu0 %v2263
    %2311 = vmatpush1.bf16.msra.mxu0 %v2262
    %2312 = vmatprep.subr.bf16.mxu0 %v2260
    %2313 = vmatpush1.bf16.msra.mxu0 %v2259
    %2314 = vmatprep.subr.bf16.mxu0 %v2257
    %2315 = vmatpush1.bf16.msra.mxu0 %v2256
    %2316 = vmatprep.subr.bf16.mxu0 %v2254
    %2317 = vmatpush1.bf16.msra.mxu0 %v2253
    %2318 = vmatprep.subr.bf16.mxu0 %v2251
    %2319 = vmatpush1.bf16.msra.mxu0 %v2250
    %2320 = vmatprep.subr.bf16.mxu0 %v2248
    %2321 = vmatpush1.bf16.msra.mxu0 %v2247
    %2322 = vmatprep.subr.bf16.mxu0 %v2245
    %2323 = vmatpush1.bf16.msra.mxu0 %v2244
    %2324 = vmatprep.subr.bf16.mxu0 0
    %2325 = vmatpush2.bf16.msra.mxu0 0
    %2326 = vmatprep.subr.bf16.mxu0 0
    %2327 = vmatpush2.bf16.msra.mxu0 0
    %2328 = vmatprep.subr.bf16.mxu0 0
    %2329 = vmatpush2.bf16.msra.mxu0 0
    %2330 = vmatprep.subr.bf16.mxu0 0
    %2331 = vmatpush2.bf16.msra.mxu0 0
    %2332 = vmatprep.subr.bf16.mxu0 0
    %2333 = vmatpush2.bf16.msra.mxu0 0
    %2334 = vmatprep.subr.bf16.mxu0 0
    %2335 = vmatpush2.bf16.msra.mxu0 0
    %2336 = vmatprep.subr.bf16.mxu0 0
    %2337 = vmatpush2.bf16.msra.mxu0 0
    %2338 = vmatprep.subr.bf16.mxu0 0
    %2339 = vmatpush2.bf16.msra.mxu0 0
    %2340 = vmatprep.mubr.bf16.mxu0 0
    %2341 = vmatmul.mubr.bf16.gmra.mxu0 %v2162
    %v2342 = vpop.f32.mrf.mxu0
    %v2343 = vadd.f32 %v2296, %v2342
    %v2344 = vpop.f32.mrf.mxu0
    %v2345 = vadd.f32 %v2300, %v2344
    %v2346 = vpop.f32.mrf.mxu0
    %v2347 = vpop.f32.mrf.mxu0
    %2348 = vdwg.mxu0
    %2349 = vmatprep.subr.bf16.mxu0 0
    %2350 = vmatpush1.bf16.msra.mxu0 %v2267
    %2351 = vmatprep.subr.bf16.mxu0 0
    %2352 = vmatpush1.bf16.msra.mxu0 %v2264
    %2353 = vmatprep.subr.bf16.mxu0 0
    %2354 = vmatpush1.bf16.msra.mxu0 %v2261
    %2355 = vmatprep.subr.bf16.mxu0 0
    %2356 = vmatpush1.bf16.msra.mxu0 %v2258
    %2357 = vmatprep.subr.bf16.mxu0 0
    %2358 = vmatpush1.bf16.msra.mxu0 %v2255
    %2359 = vmatprep.subr.bf16.mxu0 0
    %2360 = vmatpush1.bf16.msra.mxu0 %v2252
    %2361 = vmatprep.subr.bf16.mxu0 0
    %2362 = vmatpush1.bf16.msra.mxu0 %v2249
    %2363 = vmatprep.subr.bf16.mxu0 0
    %2364 = vmatpush1.bf16.msra.mxu0 %v2246
    %2365 = vmatprep.subr.bf16.mxu0 0
    %2366 = vmatpush2.bf16.msra.mxu0 0
    %2367 = vmatprep.subr.bf16.mxu0 0
    %2368 = vmatpush2.bf16.msra.mxu0 0
    %2369 = vmatprep.subr.bf16.mxu0 0
    %2370 = vmatpush2.bf16.msra.mxu0 0
    %2371 = vmatprep.subr.bf16.mxu0 0
    %2372 = vmatpush2.bf16.msra.mxu0 0
    %2373 = vmatprep.subr.bf16.mxu0 0
    %2374 = vmatpush2.bf16.msra.mxu0 0
    %2375 = vmatprep.subr.bf16.mxu0 0
    %2376 = vmatpush2.bf16.msra.mxu0 0
    %2377 = vmatprep.subr.bf16.mxu0 0
    %2378 = vmatpush2.bf16.msra.mxu0 0
    %2379 = vmatprep.subr.bf16.mxu0 0
    %2380 = vmatpush2.bf16.msra.mxu0 0
    %2381 = vmatprep.mubr.bf16.mxu0 0
    %2382 = vmatmul.mubr.bf16.gmra.mxu0 %v2162
    %v2383 = vpop.f32.mrf.mxu0
    %v2384 = vadd.f32 %v2304, %v2383
    %v2385 = vpop.f32.mrf.mxu0
    %v2386 = vpop.f32.mrf.mxu0
    %v2387 = vpop.f32.mrf.mxu0
    %2388 = vdwg.mxu0
    %v2390 = vrot.slane %v2343, 2
    %v2392 = vadd.f32 %v317, %v2390
    %v2393 = vxor.u32 %v2392, 2147483648
    %v2394 = vmul.f32 %v2393, 1.442695
    %v2395 = vpow.pop %v2394
    %v2396 = vadd.f32 %v2395, 1.0
    %v2397 = vrcp.pop %v2396
    %v2398 = vmul.f32 1.0, %v2397
    %v2400 = vrot.slane %v2345, 2
    %v2402 = vadd.f32 %v319, %v2400
    %v2403 = vxor.u32 %v2402, 2147483648
    %v2404 = vmul.f32 %v2403, 1.442695
    %v2405 = vpow.pop %v2404
    %v2406 = vadd.f32 %v2405, 1.0
    %v2407 = vrcp.pop %v2406
    %v2408 = vmul.f32 1.0, %v2407
    %v2410 = vrot.slane %v2384, 2
    %v2412 = vmul.f32 %v2398, %v2410
    %v2413 = vadd.f32 %v358, %v2412
    %v2414 = vtanh.pop %v2413
    %v2415 = vsub.f32 1.0, %v2408
    %v2416 = vmul.f32 %v2415, %v2414
    %v2418 = vrot.slane %v2123, 7
    %v2420 = vmul.f32 %v2408, %v2418
    %v2421 = vadd.f32 %v2416, %v2420
    %2422 = vst [vmem:[#allocation11] sm:$0x40] %v2421
    %v2423 = vpack.c.bf16 %v2421, %v2421
    %v2424 = vld [vmem:[#allocation10] sm:$0xff]
    %v2425 = vld [vmem:[#allocation10 + $0x8] sm:$0xf]
    %v2426 = vld [vmem:[#allocation10 + $0xc] sm:$0xff]
    %v2427 = vld [vmem:[#allocation10 + $0x14] sm:$0xf]
    %v2428 = vld [vmem:[#allocation10 + $0x18] sm:$0xff]
    %v2429 = vld [vmem:[#allocation10 + $0x20] sm:$0xf]
    %v2430 = vld [vmem:[#allocation10 + $0x24] sm:$0xff]
    %v2431 = vld [vmem:[#allocation10 + $0x2c] sm:$0xf]
    %v2432 = vld [vmem:[#allocation10 + $0x30] sm:$0xff]
    %v2433 = vld [vmem:[#allocation10 + $0x38] sm:$0xf]
    %v2434 = vld [vmem:[#allocation10 + $0x3c] sm:$0xff]
    %v2435 = vld [vmem:[#allocation10 + $0x44] sm:$0xf]
    %v2436 = vld [vmem:[#allocation10 + $0x48] sm:$0xff]
    %v2437 = vld [vmem:[#allocation10 + $0x50] sm:$0xf]
    %v2438 = vld [vmem:[#allocation10 + $0x54] sm:$0xff]
    %v2439 = vld [vmem:[#allocation10 + $0x5c] sm:$0xf]
    %v2440 = vld [vmem:[#allocation10 + $0x60] sm:$0xff]
    %v2441 = vld [vmem:[#allocation10 + $0x68] sm:$0xf]
    %v2442 = vld [vmem:[#allocation10 + $0x6c] sm:$0xff]
    %v2443 = vld [vmem:[#allocation10 + $0x74] sm:$0xf]
    %v2444 = vld [vmem:[#allocation10 + $0x78] sm:$0xff]
    %v2445 = vld [vmem:[#allocation10 + $0x80] sm:$0xf]
    %v2446 = vld [vmem:[#allocation10 + $0x84] sm:$0xff]
    %v2447 = vld [vmem:[#allocation10 + $0x8c] sm:$0xf]
    %v2448 = vld [vmem:[#allocation10 + $0x90] sm:$0xff]
    %v2449 = vld [vmem:[#allocation10 + $0x98] sm:$0xf]
    %v2450 = vld [vmem:[#allocation10 + $0x9c] sm:$0xff]
    %v2451 = vld [vmem:[#allocation10 + $0xa4] sm:$0xf]
    %v2452 = vld [vmem:[#allocation10 + $0xa8] sm:$0xff]
    %v2453 = vld [vmem:[#allocation10 + $0xb0] sm:$0xf]
    %v2454 = vld [vmem:[#allocation10 + $0xb4] sm:$0xff]
    %v2455 = vld [vmem:[#allocation10 + $0xbc] sm:$0xf]
    %v2456 = vld [vmem:[%s6] sm:$0x7]
    %v2458 = vrot.slane %v2423, 3
    %v2492 = vunpack.c.l.b16 %v2424
    %v2493 = vunpack.c.h.b16 %v2424
    %v2494 = vunpack.c.l.b16 %v2425
    %v2495 = vunpack.c.l.b16 %v2426
    %v2496 = vunpack.c.h.b16 %v2426
    %v2497 = vunpack.c.l.b16 %v2427
    %v2498 = vunpack.c.l.b16 %v2428
    %v2499 = vunpack.c.h.b16 %v2428
    %v2500 = vunpack.c.l.b16 %v2429
    %v2501 = vunpack.c.l.b16 %v2430
    %v2502 = vunpack.c.h.b16 %v2430
    %v2503 = vunpack.c.l.b16 %v2431
    %v2504 = vunpack.c.l.b16 %v2432
    %v2505 = vunpack.c.h.b16 %v2432
    %v2506 = vunpack.c.l.b16 %v2433
    %v2507 = vunpack.c.l.b16 %v2434
    %v2508 = vunpack.c.h.b16 %v2434
    %v2509 = vunpack.c.l.b16 %v2435
    %v2510 = vunpack.c.l.b16 %v2436
    %v2511 = vunpack.c.h.b16 %v2436
    %v2512 = vunpack.c.l.b16 %v2437
    %v2513 = vunpack.c.l.b16 %v2438
    %v2514 = vunpack.c.h.b16 %v2438
    %v2515 = vunpack.c.l.b16 %v2439
    %v2516 = vunpack.c.l.b16 %v2440
    %v2517 = vunpack.c.h.b16 %v2440
    %v2518 = vunpack.c.l.b16 %v2441
    %v2519 = vunpack.c.l.b16 %v2442
    %v2520 = vunpack.c.h.b16 %v2442
    %v2521 = vunpack.c.l.b16 %v2443
    %v2522 = vunpack.c.l.b16 %v2444
    %v2523 = vunpack.c.h.b16 %v2444
    %v2524 = vunpack.c.l.b16 %v2445
    %v2525 = vunpack.c.l.b16 %v2446
    %v2526 = vunpack.c.h.b16 %v2446
    %v2527 = vunpack.c.l.b16 %v2447
    %v2528 = vunpack.c.l.b16 %v2448
    %v2529 = vunpack.c.h.b16 %v2448
    %v2530 = vunpack.c.l.b16 %v2449
    %v2531 = vunpack.c.l.b16 %v2450
    %v2532 = vunpack.c.h.b16 %v2450
    %v2533 = vunpack.c.l.b16 %v2451
    %v2534 = vunpack.c.l.b16 %v2452
    %v2535 = vunpack.c.h.b16 %v2452
    %v2536 = vunpack.c.l.b16 %v2453
    %v2537 = vunpack.c.l.b16 %v2454
    %v2538 = vunpack.c.h.b16 %v2454
    %v2539 = vunpack.c.l.b16 %v2455
    %v2540 = vpack.c.b16 %v2495, %v2492
    %v2541 = vpack.c.b16 %v2496, %v2493
    %v2542 = vpack.c.b16 %v2497, %v2494
    %v2543 = vpack.c.b16 %v2501, %v2498
    %v2544 = vpack.c.b16 %v2502, %v2499
    %v2545 = vpack.c.b16 %v2503, %v2500
    %v2546 = vpack.c.b16 %v2507, %v2504
    %v2547 = vpack.c.b16 %v2508, %v2505
    %v2548 = vpack.c.b16 %v2509, %v2506
    %v2549 = vpack.c.b16 %v2513, %v2510
    %v2550 = vpack.c.b16 %v2514, %v2511
    %v2551 = vpack.c.b16 %v2515, %v2512
    %v2552 = vpack.c.b16 %v2519, %v2516
    %v2553 = vpack.c.b16 %v2520, %v2517
    %v2554 = vpack.c.b16 %v2521, %v2518
    %v2555 = vpack.c.b16 %v2525, %v2522
    %v2556 = vpack.c.b16 %v2526, %v2523
    %v2557 = vpack.c.b16 %v2527, %v2524
    %v2558 = vpack.c.b16 %v2531, %v2528
    %v2559 = vpack.c.b16 %v2532, %v2529
    %v2560 = vpack.c.b16 %v2533, %v2530
    %v2561 = vpack.c.b16 %v2537, %v2534
    %v2562 = vpack.c.b16 %v2538, %v2535
    %v2563 = vpack.c.b16 %v2539, %v2536
    %v2589 = vlaneseq
    %v2590 = vshrl.u32 %v2589, 7
    %v2591 = vsub.s32 0, %v2590
    %v2592 = vrot.slane %v2456, %v2591
    %v2593 = vlaneseq
    %v2594 = vshrl.u32 %v2593, 7
    %v2595 = vsub.s32 1, %v2594
    %v2596 = vrot.slane %v2456, %v2595
    %v2597 = vlaneseq
    %v2598 = vshrl.u32 %v2597, 7
    %v2599 = vsub.s32 2, %v2598
    %v2600 = vrot.slane %v2456, %v2599
    %2604 = vmatprep.subr.bf16.mxu0 %v2562
    %2605 = vmatpush1.bf16.msra.mxu0 %v2561
    %2606 = vmatprep.subr.bf16.mxu0 %v2559
    %2607 = vmatpush1.bf16.msra.mxu0 %v2558
    %2608 = vmatprep.subr.bf16.mxu0 %v2556
    %2609 = vmatpush1.bf16.msra.mxu0 %v2555
    %2610 = vmatprep.subr.bf16.mxu0 %v2553
    %2611 = vmatpush1.bf16.msra.mxu0 %v2552
    %2612 = vmatprep.subr.bf16.mxu0 %v2550
    %2613 = vmatpush1.bf16.msra.mxu0 %v2549
    %2614 = vmatprep.subr.bf16.mxu0 %v2547
    %2615 = vmatpush1.bf16.msra.mxu0 %v2546
    %2616 = vmatprep.subr.bf16.mxu0 %v2544
    %2617 = vmatpush1.bf16.msra.mxu0 %v2543
    %2618 = vmatprep.subr.bf16.mxu0 %v2541
    %2619 = vmatpush1.bf16.msra.mxu0 %v2540
    %2620 = vmatprep.subr.bf16.mxu0 0
    %2621 = vmatpush2.bf16.msra.mxu0 0
    %2622 = vmatprep.subr.bf16.mxu0 0
    %2623 = vmatpush2.bf16.msra.mxu0 0
    %2624 = vmatprep.subr.bf16.mxu0 0
    %2625 = vmatpush2.bf16.msra.mxu0 0
    %2626 = vmatprep.subr.bf16.mxu0 0
    %2627 = vmatpush2.bf16.msra.mxu0 0
    %2628 = vmatprep.subr.bf16.mxu0 0
    %2629 = vmatpush2.bf16.msra.mxu0 0
    %2630 = vmatprep.subr.bf16.mxu0 0
    %2631 = vmatpush2.bf16.msra.mxu0 0
    %2632 = vmatprep.subr.bf16.mxu0 0
    %2633 = vmatpush2.bf16.msra.mxu0 0
    %2634 = vmatprep.subr.bf16.mxu0 0
    %2635 = vmatpush2.bf16.msra.mxu0 0
    %2636 = vmatprep.mubr.bf16.mxu0 0
    %2637 = vmatmul.mubr.bf16.gmra.mxu0 %v2458
    %v2638 = vpop.f32.mrf.mxu0
    %v2639 = vadd.f32 %v2592, %v2638
    %v2640 = vpop.f32.mrf.mxu0
    %v2641 = vadd.f32 %v2596, %v2640
    %v2642 = vpop.f32.mrf.mxu0
    %v2643 = vpop.f32.mrf.mxu0
    %2644 = vdwg.mxu0
    %2645 = vmatprep.subr.bf16.mxu0 0
    %2646 = vmatpush1.bf16.msra.mxu0 %v2563
    %2647 = vmatprep.subr.bf16.mxu0 0
    %2648 = vmatpush1.bf16.msra.mxu0 %v2560
    %2649 = vmatprep.subr.bf16.mxu0 0
    %2650 = vmatpush1.bf16.msra.mxu0 %v2557
    %2651 = vmatprep.subr.bf16.mxu0 0
    %2652 = vmatpush1.bf16.msra.mxu0 %v2554
    %2653 = vmatprep.subr.bf16.mxu0 0
    %2654 = vmatpush1.bf16.msra.mxu0 %v2551
    %2655 = vmatprep.subr.bf16.mxu0 0
    %2656 = vmatpush1.bf16.msra.mxu0 %v2548
    %2657 = vmatprep.subr.bf16.mxu0 0
    %2658 = vmatpush1.bf16.msra.mxu0 %v2545
    %2659 = vmatprep.subr.bf16.mxu0 0
    %2660 = vmatpush1.bf16.msra.mxu0 %v2542
    %2661 = vmatprep.subr.bf16.mxu0 0
    %2662 = vmatpush2.bf16.msra.mxu0 0
    %2663 = vmatprep.subr.bf16.mxu0 0
    %2664 = vmatpush2.bf16.msra.mxu0 0
    %2665 = vmatprep.subr.bf16.mxu0 0
    %2666 = vmatpush2.bf16.msra.mxu0 0
    %2667 = vmatprep.subr.bf16.mxu0 0
    %2668 = vmatpush2.bf16.msra.mxu0 0
    %2669 = vmatprep.subr.bf16.mxu0 0
    %2670 = vmatpush2.bf16.msra.mxu0 0
    %2671 = vmatprep.subr.bf16.mxu0 0
    %2672 = vmatpush2.bf16.msra.mxu0 0
    %2673 = vmatprep.subr.bf16.mxu0 0
    %2674 = vmatpush2.bf16.msra.mxu0 0
    %2675 = vmatprep.subr.bf16.mxu0 0
    %2676 = vmatpush2.bf16.msra.mxu0 0
    %2677 = vmatprep.mubr.bf16.mxu0 0
    %2678 = vmatmul.mubr.bf16.gmra.mxu0 %v2458
    %v2679 = vpop.f32.mrf.mxu0
    %v2680 = vadd.f32 %v2600, %v2679
    %v2681 = vpop.f32.mrf.mxu0
    %v2682 = vpop.f32.mrf.mxu0
    %v2683 = vpop.f32.mrf.mxu0
    %2684 = vdwg.mxu0
    %v2686 = vrot.slane %v2639, 1
    %v2688 = vadd.f32 %v317, %v2686
    %v2689 = vxor.u32 %v2688, 2147483648
    %v2690 = vmul.f32 %v2689, 1.442695
    %v2691 = vpow.pop %v2690
    %v2692 = vadd.f32 %v2691, 1.0
    %v2693 = vrcp.pop %v2692
    %v2694 = vmul.f32 1.0, %v2693
    %v2696 = vrot.slane %v2641, 1
    %v2698 = vadd.f32 %v319, %v2696
    %v2699 = vxor.u32 %v2698, 2147483648
    %v2700 = vmul.f32 %v2699, 1.442695
    %v2701 = vpow.pop %v2700
    %v2702 = vadd.f32 %v2701, 1.0
    %v2703 = vrcp.pop %v2702
    %v2704 = vmul.f32 1.0, %v2703
    %v2706 = vrot.slane %v2680, 1
    %v2708 = vmul.f32 %v2694, %v2706
    %v2709 = vadd.f32 %v358, %v2708
    %v2710 = vtanh.pop %v2709
    %v2711 = vsub.f32 1.0, %v2704
    %v2712 = vmul.f32 %v2711, %v2710
    %v2714 = vrot.slane %v2421, 7
    %v2716 = vmul.f32 %v2704, %v2714
    %v2717 = vadd.f32 %v2712, %v2716
    %2718 = vst [vmem:[#allocation11] sm:$0x80] %v2717
    // Predicated region
    $region38: #{tpu_custom_call.1} parent=1 // pred_check
      _
    $region39: #{tpu_custom_call.1} parent=1 // pred_check_branch
      %2720 = sbr.rel (0) target = $region41
    $region40: #{tpu_custom_call.1} parent=1 // pred_region
      %s2722 = ssub.s32 128, 128
      %2723 = vsyncadd [#allocation7], %s2722
      %s2725 = sshll.u32 [#allocation11], 4
      %s2726 = int_to_ptr.vmem [resolvable:$true] %s2725
      %2728 = dma.vmem_to_hbm [thread:$0]  %s2726, 128, %s7, [#allocation7]
    $region41: #{tpu_custom_call.1} parent=1 // pred_fallthru
      _
    // Predicated region
    $region42: #{tpu_custom_call.1} parent=1 // pred_check
      _
    $region43: #{tpu_custom_call.1} parent=1 // pred_check_branch
      %2730 = sbr.rel (0) target = $region45
    $region44: #{tpu_custom_call.1} parent=1 // pred_region
      %2731 = dma.done [#allocation7], 128
    $region45: #{tpu_custom_call.1} parent=1 // pred_fallthru
      _
    %2732 = vsyncpa [#allocation6], 1
    %2733 = vsyncpa [#allocation9], 1
    %2734 = vsyncpa [#allocation7], 1

</llo_original>
